<compile_context>
chip_gen: v7x
topology: tpu7x:2x2x1
jax: 0.10.0
libtpu: 0.0.40
codegen_flags: <defaults>
</compile_context>

<pallas_src>
import functools

import jax
import jax.numpy as jnp
from jax.experimental import pallas as pl
from jax.experimental.pallas import tpu as pltpu

EPS = 1e-5


# ------------------------------ small helpers ------------------------------ #

@functools.lru_cache(maxsize=1)
def _vmem_limit_bytes():
    """Generation-aware scoped-VMEM limit (v7x has only 64 MiB per TC)."""
    cap = 64 * 1024 * 1024
    try:
        cap = int(pltpu.get_tpu_info().vmem_capacity_bytes)
    except Exception:
        pass
    return int(min(cap * 3 // 4, 100 * 1024 * 1024))


def _mish(y):
    # mish(y) = y * tanh(softplus(y)).  Single-exp formulation (one EUP exp +
    # one divide instead of exp + log1p + tanh):
    #     tanh(log1p(e)) = e*(e+2) / (e*(e+2) + 2),   e = exp(y)
    # clamped at PyTorch's softplus threshold (20), beyond which mish(y) == y.
    e = jnp.exp(jnp.minimum(y, 20.0))
    num = e * (e + 2.0)
    return y * (num / (num + 2.0))


def _tile_lanes(v, lanes):
    """Per-channel vector tiled so lane l holds v[l % C]  ->  shape (1, lanes)."""
    return jnp.tile(v.astype(jnp.float32), lanes // v.shape[0]).reshape(1, lanes)


def _stats_to_affine(sum_l, ssq_l, channels, count, gamma, beta):
    """Fold per-lane (sum, sumsq) into per-channel training-mode BN (scale, shift)."""
    lanes = sum_l.shape[-1]
    ch_sum = sum_l.reshape(lanes // channels, channels).sum(axis=0)
    ch_ssq = ssq_l.reshape(lanes // channels, channels).sum(axis=0)
    mean = ch_sum / count
    var = ch_ssq / count - mean * mean          # biased variance (training mode)
    scale = gamma / jnp.sqrt(var + EPS)
    shift = beta - mean * scale
    return scale, shift


def _build_band(w_oihw, w, wo, stride, pad):
    """Banded weight matrix for the K = 3*W*Cin formulation:
    band[kh*W*Cin + wi*Cin + ci, wo*Cout + co] = W[co, ci, kh, wi - wo*stride + pad],
    zero outside the 3-tap window (that IS the W-direction zero padding).
    NOTE: for production cache this per weight update instead of per forward."""
    cout, cin = w_oihw.shape[0], w_oihw.shape[1]
    wt = jnp.transpose(w_oihw, (2, 3, 1, 0))                       # (3,3,Cin,Cout)
    kw = jnp.arange(w)[:, None] - jnp.arange(wo)[None, :] * stride + pad
    valid = (kw >= 0) & (kw < 3)                                   # (W, Wo)
    band = wt[:, jnp.clip(kw, 0, 2), :, :]                         # (3,W,Wo,Cin,Cout)
    band = band * valid[None, :, :, None, None].astype(wt.dtype)
    band = jnp.transpose(band, (0, 1, 3, 2, 4))                    # (3,W,Cin,Wo,Cout)
    return band.reshape(3 * w * cin, wo * cout).astype(jnp.float32)


def _pick_batch_block(n, h, ho, wc, wq, *, min_grid=1):
    """Images folded per grid step: batch rows stacked into the matmul M."""
    limit = max(1, n // min_grid) if min_grid > 1 else n
    per_img_bytes = 4 * (h * wc + 3 * ho * wc + 2 * ho * wq)   # x + LHS + out/skip
    best = 1
    for nb in range(1, limit + 1):
        if n % nb:
            continue
        if nb != n and ((nb * h) % 8 or (nb * ho) % 8):
            continue                       # keep block rows sublane-aligned
        if nb > 1 and nb * per_img_bytes > 8 * 1024 * 1024:
            break
        best = nb
        if nb * ho >= 256:                 # enough M to fill the MXU
            break
    if best != n and ((best * h) % 8 or (best * ho) % 8):
        best = n                           # full-array block is always legal
    return best


# ------------------------------- fused kernel ------------------------------- #

def _fused_conv_kernel(*refs, nb, h, wc, ho, wq, stride, pad,
                       has_prologue, has_residual, out_stats, in_stats):
    it = iter(refs)
    x_ref = next(it)
    band_ref = next(it)
    if has_prologue:
        ps_ref = next(it); pt_ref = next(it)
    if has_residual:
        bias_ref = next(it); skip_ref = next(it); ss_ref = next(it); st_ref = next(it)
    o_ref = next(it)
    if out_stats:
        osum_ref = next(it); ossq_ref = next(it)
    if in_stats:
        isum_ref = next(it); issq_ref = next(it)
    xrows_ref = next(it)                                   # (nb*Ho, 3*W*Cin) f32

    if out_stats or in_stats:
        # stats convs run with an "arbitrary" (sequential) grid axis, so a
        # program_id==0 init of the resident accumulators is safe.
        @pl.when(pl.program_id(0) == 0)
        def _init():
            if out_stats:
                osum_ref[...] = jnp.zeros_like(osum_ref)
                ossq_ref[...] = jnp.zeros_like(ossq_ref)
            if in_stats:
                isum_ref[...] = jnp.zeros_like(isum_ref)
                issq_ref[...] = jnp.zeros_like(issq_ref)

    xf = x_ref[...].astype(jnp.float32)                    # (nb*H, W*Cin)

    if in_stats:                                           # stats of the conv INPUT
        isum_ref[...] += jnp.sum(xf, axis=0, keepdims=True)
        issq_ref[...] += jnp.sum(xf * xf, axis=0, keepdims=True)

    if has_prologue:                                       # fused BN-affine + Mish
        xf = _mish(xf * ps_ref[...] + pt_ref[...])

    # Scatter the three shifted row-windows into the K = 3*W*Cin matmul LHS.
    # Only the boundary "hole" rows are zeroed each step (cheap and safe even
    # when the grid axis is split across cores); interior rows are fully
    # overwritten every step.
    for b in range(nb):
        for kh in range(3):
            lane0, lane1 = kh * wc, (kh + 1) * wc
            oh_lo = max(0, -((kh - pad) // stride))
            oh_hi = min(ho - 1, (h - 1 + pad - kh) // stride)
            if oh_lo > 0:
                xrows_ref[b * ho:b * ho + oh_lo, lane0:lane1] = jnp.zeros(
                    (oh_lo, wc), jnp.float32)
            if oh_hi < ho - 1:
                xrows_ref[b * ho + oh_hi + 1:(b + 1) * ho, lane0:lane1] = jnp.zeros(
                    (ho - 1 - oh_hi, wc), jnp.float32)
            if oh_hi < oh_lo:
                continue
            count = oh_hi - oh_lo + 1
            src0 = b * h + oh_lo * stride + kh - pad
            if stride == 1:
                rows = xf[src0:src0 + count, :]
            else:
                # TODO(synk): strided-row path derived but not exercised by the
                # stride=1 test below.
                rows = xf[src0:src0 + (count - 1) * stride + 1:stride, :]
            xrows_ref[b * ho + oh_lo:b * ho + oh_lo + count, lane0:lane1] = rows

    # One MXU matmul, K = 3*W*Cin, f32 register accumulation (no acc scratch).
    res = jnp.dot(xrows_ref[...], band_ref[...],
                  preferred_element_type=jnp.float32)      # (nb*Ho, Wo*Cout)

    if out_stats:                                          # stats of the conv OUTPUT
        osum_ref[...] += jnp.sum(res, axis=0, keepdims=True)
        ossq_ref[...] += jnp.sum(res * res, axis=0, keepdims=True)

    if has_residual:                                       # + bias + BN-affine(skip)
        res = (res + bias_ref[...]
               + skip_ref[...].astype(jnp.float32) * ss_ref[...] + st_ref[...])

    o_ref[...] = res.astype(o_ref.dtype)


# ------------------------------ Pallas wrapper ------------------------------ #

def conv3x3(x2d, w_oihw, *, n, h, w, cin, stride, pad,
            prologue=None, residual=None, in_stats=False, out_stats=False):
    """Fused 3x3 conv over a lane-dense (N*H, W*Cin) activation slab.

    Optional fusions:
      prologue = (scale, shift): apply mish(x*scale + shift) to the input
                 (a preceding training-mode BatchNorm + Mish),
      residual = (bias, skip2d, sscale, sshift): epilogue
                 out = conv + bias + skip*sscale + sshift,
      in_stats / out_stats: per-lane sum/sumsq of the conv input / output
                 (for a training-mode BatchNorm) accumulated in the kernel.
    Returns (out2d (N*Ho, Wo*Cout), in_stats pair | None, out_stats pair | None).
    """
    cout = w_oihw.shape[0]
    wc = w * cin
    assert x2d.shape == (n * h, wc) and w_oihw.shape[1] == cin
    ho = (h + 2 * pad - 3) // stride + 1
    wo = (w + 2 * pad - 3) // stride + 1
    wq = wo * cout

    band = _build_band(w_oihw, w, wo, stride, pad)                 # (3*wc, wq)

    has_stats = in_stats or out_stats
    nb = _pick_batch_block(n, h, ho, wc, wq, min_grid=1 if has_stats else 2)
    grid = (n // nb,)

    vec_wc = pl.BlockSpec((1, wc), lambda i: (0, 0))
    vec_wq = pl.BlockSpec((1, wq), lambda i: (0, 0))

    in_specs = [pl.BlockSpec((nb * h, wc), lambda i: (i, 0)),
                pl.BlockSpec((3 * wc, wq), lambda i: (0, 0))]
    inputs = [x2d, band]
    if prologue is not None:
        s, t = prologue
        in_specs += [vec_wc, vec_wc]
        inputs += [_tile_lanes(s, wc), _tile_lanes(t, wc)]
    if residual is not None:
        bias, skip2d, sscale, sshift = residual
        in_specs += [vec_wq, pl.BlockSpec((nb * ho, wq), lambda i: (i, 0)),
                     vec_wq, vec_wq]
        inputs += [_tile_lanes(bias, wq), skip2d,
                   _tile_lanes(sscale, wq), _tile_lanes(sshift, wq)]

    out_shapes = [jax.ShapeDtypeStruct((n * ho, wq), x2d.dtype)]
    out_specs = [pl.BlockSpec((nb * ho, wq), lambda i: (i, 0))]
    if out_stats:
        out_shapes += [jax.ShapeDtypeStruct((1, wq), jnp.float32)] * 2
        out_specs += [vec_wq, vec_wq]
    if in_stats:
        out_shapes += [jax.ShapeDtypeStruct((1, wc), jnp.float32)] * 2
        out_specs += [vec_wc, vec_wc]

    kernel = functools.partial(
        _fused_conv_kernel, nb=nb, h=h, wc=wc, ho=ho, wq=wq, stride=stride,
        pad=pad, has_prologue=prologue is not None,
        has_residual=residual is not None, out_stats=out_stats,
        in_stats=in_stats)

    results = pl.pallas_call(
        kernel,
        out_shape=tuple(out_shapes),
        grid=grid,
        in_specs=in_specs,
        out_specs=tuple(out_specs),
        scratch_shapes=[pltpu.VMEM((nb * ho, 3 * wc), jnp.float32)],
        compiler_params=pltpu.CompilerParams(
            dimension_semantics=("arbitrary",) if has_stats else ("parallel",),
            vmem_limit_bytes=_vmem_limit_bytes()),
    )(*inputs)

    out2d = results[0]
    idx = 1
    ostats = istats = None
    if out_stats:
        ostats = (results[idx], results[idx + 1]); idx += 2
    if in_stats:
        istats = (results[idx], results[idx + 1]); idx += 2
    return out2d, istats, ostats


# --------------------------- ResidualConv forward --------------------------- #

def residual_conv_forward_nhwc(x_nhwc, params, stride, padding):
    n, h, w, cin = x_nhwc.shape
    cout = params["w1"].shape[0]
    x2d = x_nhwc.reshape(n * h, w * cin)          # lane-dense activation slab (free)

    ho = (h + 2 * padding - 3) // stride + 1
    wo = (w + 2 * padding - 3) // stride + 1
    hs = (h + 2 - 3) // stride + 1
    ws_ = (w + 2 - 3) // stride + 1
    assert (ho, wo) == (hs, ws_), "branch output shapes must match (as in PyTorch)"

    # 1) skip conv  (bias bs dropped: cancelled by training-mode BNs)
    #    + fused stats of x (for BN1) and of cs (for BNs)
    cs2d, (xsum, xssq), (csum, cssq) = conv3x3(
        x2d, params["ws"], n=n, h=h, w=w, cin=cin, stride=stride, pad=1,
        in_stats=True, out_stats=True)

    s1, t1 = _stats_to_affine(xsum, xssq, cin, n * h * w, params["g1"], params["be1"])
    ss, ts = _stats_to_affine(csum, cssq, cout, n * ho * wo, params["gs"], params["bes"])

    # 2) main conv1 (bias b1 dropped: cancelled by BN2)
    #    + fused BN1-affine+Mish prologue + fused stats of c1 (for BN2)
    c12d, _, (c1sum, c1ssq) = conv3x3(
        x2d, params["w1"], n=n, h=h, w=w, cin=cin, stride=stride, pad=padding,
        prologue=(s1, t1), out_stats=True)

    s2, t2 = _stats_to_affine(c1sum, c1ssq, cout, n * ho * wo,
                              params["g2"], params["be2"])

    # 3) main conv2 + fused BN2-affine+Mish prologue + fused residual epilogue
    #        out = conv2(mish(c1*s2 + t2)) + b2 + cs*ss + ts
    out2d, _, _ = conv3x3(
        c12d, params["w2"], n=n, h=ho, w=wo, cin=cout, stride=1, pad=1,
        prologue=(s2, t2), residual=(params["b2"], cs2d, ss, ts))

    return out2d.reshape(n, ho, wo, cout)


@functools.partial(jax.jit, static_argnums=(2, 3))
def residual_conv_forward(x_nchw, params, stride, padding):
    # NCHW adapter for PyTorch parity.  NHWC callers should use the core
    # directly and skip both boundary transposes.
    x = jnp.transpose(x_nchw, (0, 2, 3, 1))
    out = residual_conv_forward_nhwc(x, params, stride, padding)
    return jnp.transpose(out, (0, 3, 1, 2))


# ------------------------------ pure-JAX ref -------------------------------- #

def residual_conv_ref(x, params, stride, padding):
    def bn(v, g, b):
        mean = v.mean(axis=(0, 2, 3), keepdims=True)
        var = ((v - mean) ** 2).mean(axis=(0, 2, 3), keepdims=True)
        return (v - mean) / jnp.sqrt(var + EPS) * g.reshape(1, -1, 1, 1) + b.reshape(1, -1, 1, 1)

    def mish(v):
        return v * jnp.tanh(jax.nn.softplus(v))

    def conv(v, wgt, b, s, p):
        y = jax.lax.conv_general_dilated(v, wgt, (s, s), [(p, p), (p, p)],
                                         dimension_numbers=("NCHW", "OIHW", "NCHW"))
        return y + b.reshape(1, -1, 1, 1)

    hcb = conv(mish(bn(x, params["g1"], params["be1"])), params["w1"], params["b1"], stride, padding)
    hcb = conv(mish(bn(hcb, params["g2"], params["be2"])), params["w2"], params["b2"], 1, 1)
    skip = bn(conv(x, params["ws"], params["bs"], stride, 1), params["gs"], params["bes"])
    return hcb + skip


# ---------------------------------- main ------------------------------------ #

if __name__ == "__main__":
    input_dim, output_dim, stride, padding = 4, 8, 1, 1
    N, H, W = 2, 16, 16

    key = jax.random.PRNGKey(0)
    ks = jax.random.split(key, 12)
    params = {
        # BatchNorm2d(input_dim)
        "g1": 1.0 + 0.1 * jax.random.normal(ks[0], (input_dim,), jnp.float32),
        "be1": 0.1 * jax.random.normal(ks[1], (input_dim,), jnp.float32),
        # Conv2d(input_dim, output_dim, 3, stride, padding)
        "w1": 0.1 * jax.random.normal(ks[2], (output_dim, input_dim, 3, 3), jnp.float32),
        "b1": 0.1 * jax.random.normal(ks[3], (output_dim,), jnp.float32),
        # BatchNorm2d(output_dim)
        "g2": 1.0 + 0.1 * jax.random.normal(ks[4], (output_dim,), jnp.float32),
        "be2": 0.1 * jax.random.normal(ks[5], (output_dim,), jnp.float32),
        # Conv2d(output_dim, output_dim, 3, padding=1)
        "w2": 0.1 * jax.random.normal(ks[6], (output_dim, output_dim, 3, 3), jnp.float32),
        "b2": 0.1 * jax.random.normal(ks[7], (output_dim,), jnp.float32),
        # skip: Conv2d(input_dim, output_dim, 3, stride, padding=1) + BN(output_dim)
        "ws": 0.1 * jax.random.normal(ks[8], (output_dim, input_dim, 3, 3), jnp.float32),
        "bs": 0.1 * jax.random.normal(ks[9], (output_dim,), jnp.float32),
        "gs": 1.0 + 0.1 * jax.random.normal(ks[10], (output_dim,), jnp.float32),
        "bes": 0.1 * jax.random.normal(ks[11], (output_dim,), jnp.float32),
    }

    x = jax.random.normal(jax.random.PRNGKey(42), (N, input_dim, H, W), jnp.float32)

    out = residual_conv_forward(x, params, stride, padding)
    out = jax.block_until_ready(out)

    ref = residual_conv_ref(x, params, stride, padding)
    assert out.shape == (N, output_dim, H, W), out.shape
    assert jnp.allclose(out, ref, rtol=1e-3, atol=1e-3), float(jnp.max(jnp.abs(out - ref)))

    print("KERNEL_OK")
</pallas_src>

<mosaic_0001>
module attributes {stable_mosaic.version = 11 : i64} {
  func.func @_fused_conv_kernel(%arg0: i32, %arg1: memref<32x64xf32, #tpu.memory_space<vmem>>, %arg2: memref<192x128xf32, #tpu.memory_space<vmem>>, %arg3: memref<32x128xf32, #tpu.memory_space<vmem>>, %arg4: memref<1x128xf32, #tpu.memory_space<vmem>>, %arg5: memref<1x128xf32, #tpu.memory_space<vmem>>, %arg6: memref<1x64xf32, #tpu.memory_space<vmem>>, %arg7: memref<1x64xf32, #tpu.memory_space<vmem>>, %arg8: memref<32x192xf32, #tpu.memory_space<vmem>>) attributes {dimension_semantics = [#tpu.dimension_semantics<arbitrary>], iteration_bounds = array<i64: 1>, scalar_prefetch = 0 : i64, scratch_operands = 1 : i64, tpu.core_type = #tpu.core_type<tc>, window_params = [{transform_indices = @transform_0, window_bounds = array<i64: 32, 64>}, {pipeline_mode = #tpu.pipeline_mode<synchronous>, transform_indices = @transform_1, window_bounds = array<i64: 192, 128>}, {transform_indices = @transform_2, window_bounds = array<i64: 32, 128>}, {pipeline_mode = #tpu.pipeline_mode<synchronous>, transform_indices = @transform_3, window_bounds = array<i64: 1, 128>}, {pipeline_mode = #tpu.pipeline_mode<synchronous>, transform_indices = @transform_4, window_bounds = array<i64: 1, 128>}, {pipeline_mode = #tpu.pipeline_mode<synchronous>, transform_indices = @transform_5, window_bounds = array<i64: 1, 64>}, {pipeline_mode = #tpu.pipeline_mode<synchronous>, transform_indices = @transform_6, window_bounds = array<i64: 1, 64>}]} {
    %c0_i32 = arith.constant 0 : i32
    %0 = arith.cmpi eq, %arg0, %c0_i32 : i32
    %1 = arith.extui %0 : i1 to i32
    %c0_i32_0 = arith.constant 0 : i32
    %2 = arith.cmpi ne, %1, %c0_i32_0 : i32
    scf.if %2 {
      %cst_45 = arith.constant 0.000000e+00 : f32
      %50 = vector.broadcast %cst_45 : f32 to vector<1x128xf32>
      %c0_46 = arith.constant 0 : index
      %c0_47 = arith.constant 0 : index
      %51 = vector.load %arg4[%c0_46, %c0_47] : memref<1x128xf32, #tpu.memory_space<vmem>>, vector<1x128xf32>
      tpu.vector_store %arg4[%c0_46, %c0_47], %50 {strides = array<i32>} : memref<1x128xf32, #tpu.memory_space<vmem>>, vector<1x128xf32>,
      %cst_48 = arith.constant 0.000000e+00 : f32
      %52 = vector.broadcast %cst_48 : f32 to vector<1x128xf32>
      %c0_49 = arith.constant 0 : index
      %c0_50 = arith.constant 0 : index
      %53 = vector.load %arg5[%c0_49, %c0_50] : memref<1x128xf32, #tpu.memory_space<vmem>>, vector<1x128xf32>
      tpu.vector_store %arg5[%c0_49, %c0_50], %52 {strides = array<i32>} : memref<1x128xf32, #tpu.memory_space<vmem>>, vector<1x128xf32>,
      %cst_51 = arith.constant 0.000000e+00 : f32
      %54 = vector.broadcast %cst_51 : f32 to vector<1x64xf32>
      %c0_52 = arith.constant 0 : index
      %c0_53 = arith.constant 0 : index
      %55 = vector.load %arg6[%c0_52, %c0_53] : memref<1x64xf32, #tpu.memory_space<vmem>>, vector<1x64xf32>
      tpu.vector_store %arg6[%c0_52, %c0_53], %54 {strides = array<i32>} : memref<1x64xf32, #tpu.memory_space<vmem>>, vector<1x64xf32>,
      %cst_54 = arith.constant 0.000000e+00 : f32
      %56 = vector.broadcast %cst_54 : f32 to vector<1x64xf32>
      %c0_55 = arith.constant 0 : index
      %c0_56 = arith.constant 0 : index
      %57 = vector.load %arg7[%c0_55, %c0_56] : memref<1x64xf32, #tpu.memory_space<vmem>>, vector<1x64xf32>
      tpu.vector_store %arg7[%c0_55, %c0_56], %56 {strides = array<i32>} : memref<1x64xf32, #tpu.memory_space<vmem>>, vector<1x64xf32>,
    } else {
    }
    %c0 = arith.constant 0 : index
    %c0_1 = arith.constant 0 : index
    %3 = vector.load %arg1[%c0, %c0_1] : memref<32x64xf32, #tpu.memory_space<vmem>>, vector<32x64xf32>
    %c0_2 = arith.constant 0 : index
    %c0_3 = arith.constant 0 : index
    %4 = vector.load %arg6[%c0_2, %c0_3] : memref<1x64xf32, #tpu.memory_space<vmem>>, vector<1x64xf32>
    %cst = arith.constant dense<0.000000e+00> : vector<64xf32>
    %5 = vector.multi_reduction <add>, %3, %cst [0] : vector<32x64xf32> to vector<64xf32>
    %6 = vector.shape_cast %5 : vector<64xf32> to vector<1x64xf32>
    %7 = arith.addf %4, %6 : vector<1x64xf32>
    %c0_4 = arith.constant 0 : index
    %c0_5 = arith.constant 0 : index
    %8 = vector.load %arg6[%c0_4, %c0_5] : memref<1x64xf32, #tpu.memory_space<vmem>>, vector<1x64xf32>
    tpu.vector_store %arg6[%c0_4, %c0_5], %7 {strides = array<i32>} : memref<1x64xf32, #tpu.memory_space<vmem>>, vector<1x64xf32>,
    %c0_6 = arith.constant 0 : index
    %c0_7 = arith.constant 0 : index
    %9 = vector.load %arg7[%c0_6, %c0_7] : memref<1x64xf32, #tpu.memory_space<vmem>>, vector<1x64xf32>
    %10 = arith.mulf %3, %3 : vector<32x64xf32>
    %cst_8 = arith.constant dense<0.000000e+00> : vector<64xf32>
    %11 = vector.multi_reduction <add>, %10, %cst_8 [0] : vector<32x64xf32> to vector<64xf32>
    %12 = vector.shape_cast %11 : vector<64xf32> to vector<1x64xf32>
    %13 = arith.addf %9, %12 : vector<1x64xf32>
    %c0_9 = arith.constant 0 : index
    %c0_10 = arith.constant 0 : index
    %14 = vector.load %arg7[%c0_9, %c0_10] : memref<1x64xf32, #tpu.memory_space<vmem>>, vector<1x64xf32>
    tpu.vector_store %arg7[%c0_9, %c0_10], %13 {strides = array<i32>} : memref<1x64xf32, #tpu.memory_space<vmem>>, vector<1x64xf32>,
    %cst_11 = arith.constant 0.000000e+00 : f32
    %15 = vector.broadcast %cst_11 : f32 to vector<1x64xf32>
    %c0_12 = arith.constant 0 : index
    %c0_13 = arith.constant 0 : index
    %16 = vector.load %arg8[%c0_12, %c0_13] : memref<32x192xf32, #tpu.memory_space<vmem>>, vector<1x64xf32>
    tpu.vector_store %arg8[%c0_12, %c0_13], %15 {strides = array<i32>} : memref<32x192xf32, #tpu.memory_space<vmem>>, vector<1x64xf32>,
    %17 = vector.extract_strided_slice %3 {offsets = [0, 0], sizes = [15, 64], strides = [1, 1]} : vector<32x64xf32> to vector<15x64xf32>
    %c1 = arith.constant 1 : index
    %c0_14 = arith.constant 0 : index
    %18 = vector.load %arg8[%c1, %c0_14] : memref<32x192xf32, #tpu.memory_space<vmem>>, vector<15x64xf32>
    tpu.vector_store %arg8[%c1, %c0_14], %17 {strides = array<i32>} : memref<32x192xf32, #tpu.memory_space<vmem>>, vector<15x64xf32>,
    %19 = vector.extract_strided_slice %3 {offsets = [0, 0], sizes = [16, 64], strides = [1, 1]} : vector<32x64xf32> to vector<16x64xf32>
    %c0_15 = arith.constant 0 : index
    %c64 = arith.constant 64 : index
    %20 = vector.load %arg8[%c0_15, %c64] : memref<32x192xf32, #tpu.memory_space<vmem>>, vector<16x64xf32>
    tpu.vector_store %arg8[%c0_15, %c64], %19 {strides = array<i32>} : memref<32x192xf32, #tpu.memory_space<vmem>>, vector<16x64xf32>,
    %cst_16 = arith.constant 0.000000e+00 : f32
    %21 = vector.broadcast %cst_16 : f32 to vector<1x64xf32>
    %c15 = arith.constant 15 : index
    %c128 = arith.constant 128 : index
    %22 = vector.load %arg8[%c15, %c128] : memref<32x192xf32, #tpu.memory_space<vmem>>, vector<1x64xf32>
    tpu.vector_store %arg8[%c15, %c128], %21 {strides = array<i32>} : memref<32x192xf32, #tpu.memory_space<vmem>>, vector<1x64xf32>,
    %23 = vector.extract_strided_slice %3 {offsets = [1, 0], sizes = [15, 64], strides = [1, 1]} : vector<32x64xf32> to vector<15x64xf32>
    %c0_17 = arith.constant 0 : index
    %c128_18 = arith.constant 128 : index
    %24 = vector.load %arg8[%c0_17, %c128_18] : memref<32x192xf32, #tpu.memory_space<vmem>>, vector<15x64xf32>
    tpu.vector_store %arg8[%c0_17, %c128_18], %23 {strides = array<i32>} : memref<32x192xf32, #tpu.memory_space<vmem>>, vector<15x64xf32>,
    %cst_19 = arith.constant 0.000000e+00 : f32
    %25 = vector.broadcast %cst_19 : f32 to vector<1x64xf32>
    %c16 = arith.constant 16 : index
    %c0_20 = arith.constant 0 : index
    %26 = vector.load %arg8[%c16, %c0_20] : memref<32x192xf32, #tpu.memory_space<vmem>>, vector<1x64xf32>
    tpu.vector_store %arg8[%c16, %c0_20], %25 {strides = array<i32>} : memref<32x192xf32, #tpu.memory_space<vmem>>, vector<1x64xf32>,
    %27 = vector.extract_strided_slice %3 {offsets = [16, 0], sizes = [15, 64], strides = [1, 1]} : vector<32x64xf32> to vector<15x64xf32>
    %c17 = arith.constant 17 : index
    %c0_21 = arith.constant 0 : index
    %28 = vector.load %arg8[%c17, %c0_21] : memref<32x192xf32, #tpu.memory_space<vmem>>, vector<15x64xf32>
    tpu.vector_store %arg8[%c17, %c0_21], %27 {strides = array<i32>} : memref<32x192xf32, #tpu.memory_space<vmem>>, vector<15x64xf32>,
    %29 = vector.extract_strided_slice %3 {offsets = [16, 0], sizes = [16, 64], strides = [1, 1]} : vector<32x64xf32> to vector<16x64xf32>
    %c16_22 = arith.constant 16 : index
    %c64_23 = arith.constant 64 : index
    %30 = vector.load %arg8[%c16_22, %c64_23] : memref<32x192xf32, #tpu.memory_space<vmem>>, vector<16x64xf32>
    tpu.vector_store %arg8[%c16_22, %c64_23], %29 {strides = array<i32>} : memref<32x192xf32, #tpu.memory_space<vmem>>, vector<16x64xf32>,
    %cst_24 = arith.constant 0.000000e+00 : f32
    %31 = vector.broadcast %cst_24 : f32 to vector<1x64xf32>
    %c31 = arith.constant 31 : index
    %c128_25 = arith.constant 128 : index
    %32 = vector.load %arg8[%c31, %c128_25] : memref<32x192xf32, #tpu.memory_space<vmem>>, vector<1x64xf32>
    tpu.vector_store %arg8[%c31, %c128_25], %31 {strides = array<i32>} : memref<32x192xf32, #tpu.memory_space<vmem>>, vector<1x64xf32>,
    %33 = vector.extract_strided_slice %3 {offsets = [17, 0], sizes = [15, 64], strides = [1, 1]} : vector<32x64xf32> to vector<15x64xf32>
    %c16_26 = arith.constant 16 : index
    %c128_27 = arith.constant 128 : index
    %34 = vector.load %arg8[%c16_26, %c128_27] : memref<32x192xf32, #tpu.memory_space<vmem>>, vector<15x64xf32>
    tpu.vector_store %arg8[%c16_26, %c128_27], %33 {strides = array<i32>} : memref<32x192xf32, #tpu.memory_space<vmem>>, vector<15x64xf32>,
    %c0_28 = arith.constant 0 : index
    %c0_29 = arith.constant 0 : index
    %35 = vector.load %arg8[%c0_28, %c0_29] : memref<32x192xf32, #tpu.memory_space<vmem>>, vector<32x192xf32>
    %c0_30 = arith.constant 0 : index
    %c0_31 = arith.constant 0 : index
    %36 = vector.load %arg2[%c0_30, %c0_31] : memref<192x128xf32, #tpu.memory_space<vmem>>, vector<192x128xf32>
    %cst_32 = arith.constant dense<0.000000e+00> : vector<32x128xf32>
    %37 = tpu.matmul %35, %36, %cst_32 {dimension_numbers = #tpu.dot_dimension_numbers<[1], [0], [0], [1], [0, 0, 1, 1], [], []>} : vector<32x192xf32>, vector<192x128xf32>, vector<32x128xf32> -> vector<32x128xf32>
    %c0_33 = arith.constant 0 : index
    %c0_34 = arith.constant 0 : index
    %38 = vector.load %arg4[%c0_33, %c0_34] : memref<1x128xf32, #tpu.memory_space<vmem>>, vector<1x128xf32>
    %cst_35 = arith.constant dense<0.000000e+00> : vector<128xf32>
    %39 = vector.multi_reduction <add>, %37, %cst_35 [0] : vector<32x128xf32> to vector<128xf32>
    %40 = vector.shape_cast %39 : vector<128xf32> to vector<1x128xf32>
    %41 = arith.addf %38, %40 : vector<1x128xf32>
    %c0_36 = arith.constant 0 : index
    %c0_37 = arith.constant 0 : index
    %42 = vector.load %arg4[%c0_36, %c0_37] : memref<1x128xf32, #tpu.memory_space<vmem>>, vector<1x128xf32>
    tpu.vector_store %arg4[%c0_36, %c0_37], %41 {strides = array<i32>} : memref<1x128xf32, #tpu.memory_space<vmem>>, vector<1x128xf32>,
    %c0_38 = arith.constant 0 : index
    %c0_39 = arith.constant 0 : index
    %43 = vector.load %arg5[%c0_38, %c0_39] : memref<1x128xf32, #tpu.memory_space<vmem>>, vector<1x128xf32>
    %44 = arith.mulf %37, %37 : vector<32x128xf32>
    %cst_40 = arith.constant dense<0.000000e+00> : vector<128xf32>
    %45 = vector.multi_reduction <add>, %44, %cst_40 [0] : vector<32x128xf32> to vector<128xf32>
    %46 = vector.shape_cast %45 : vector<128xf32> to vector<1x128xf32>
    %47 = arith.addf %43, %46 : vector<1x128xf32>
    %c0_41 = arith.constant 0 : index
    %c0_42 = arith.constant 0 : index
    %48 = vector.load %arg5[%c0_41, %c0_42] : memref<1x128xf32, #tpu.memory_space<vmem>>, vector<1x128xf32>
    tpu.vector_store %arg5[%c0_41, %c0_42], %47 {strides = array<i32>} : memref<1x128xf32, #tpu.memory_space<vmem>>, vector<1x128xf32>,
    %c0_43 = arith.constant 0 : index
    %c0_44 = arith.constant 0 : index
    %49 = vector.load %arg3[%c0_43, %c0_44] : memref<32x128xf32, #tpu.memory_space<vmem>>, vector<32x128xf32>
    tpu.vector_store %arg3[%c0_43, %c0_44], %37 {strides = array<i32>} : memref<32x128xf32, #tpu.memory_space<vmem>>, vector<32x128xf32>,
    return
  }
  func.func @transform_0(%arg0: i32) -> (i32, i32) {
    %c0_i32 = arith.constant 0 : i32
    %c0_i32_0 = arith.constant 0 : i32
    return %arg0, %c0_i32 : i32, i32
  }
  func.func @transform_1(%arg0: i32) -> (i32, i32) {
    %c0_i32 = arith.constant 0 : i32
    %c0_i32_0 = arith.constant 0 : i32
    %c0_i32_1 = arith.constant 0 : i32
    return %c0_i32, %c0_i32_0 : i32, i32
  }
  func.func @transform_2(%arg0: i32) -> (i32, i32) {
    %c0_i32 = arith.constant 0 : i32
    %c0_i32_0 = arith.constant 0 : i32
    return %arg0, %c0_i32 : i32, i32
  }
  func.func @transform_3(%arg0: i32) -> (i32, i32) {
    %c0_i32 = arith.constant 0 : i32
    %c0_i32_0 = arith.constant 0 : i32
    %c0_i32_1 = arith.constant 0 : i32
    return %c0_i32, %c0_i32_0 : i32, i32
  }
  func.func @transform_4(%arg0: i32) -> (i32, i32) {
    %c0_i32 = arith.constant 0 : i32
    %c0_i32_0 = arith.constant 0 : i32
    %c0_i32_1 = arith.constant 0 : i32
    return %c0_i32, %c0_i32_0 : i32, i32
  }
  func.func @transform_5(%arg0: i32) -> (i32, i32) {
    %c0_i32 = arith.constant 0 : i32
    %c0_i32_0 = arith.constant 0 : i32
    %c0_i32_1 = arith.constant 0 : i32
    return %c0_i32, %c0_i32_0 : i32, i32
  }
  func.func @transform_6(%arg0: i32) -> (i32, i32) {
    %c0_i32 = arith.constant 0 : i32
    %c0_i32_0 = arith.constant 0 : i32
    %c0_i32_1 = arith.constant 0 : i32
    return %c0_i32, %c0_i32_0 : i32, i32
  }
}

module attributes {stable_mosaic.version = 11 : i64} {
  func.func @_fused_conv_kernel(%arg0: i32, %arg1: memref<32x64xf32, #tpu.memory_space<vmem>>, %arg2: memref<192x128xf32, #tpu.memory_space<vmem>>, %arg3: memref<1x64xf32, #tpu.memory_space<vmem>>, %arg4: memref<1x64xf32, #tpu.memory_space<vmem>>, %arg5: memref<32x128xf32, #tpu.memory_space<vmem>>, %arg6: memref<1x128xf32, #tpu.memory_space<vmem>>, %arg7: memref<1x128xf32, #tpu.memory_space<vmem>>, %arg8: memref<32x192xf32, #tpu.memory_space<vmem>>) attributes {dimension_semantics = [#tpu.dimension_semantics<arbitrary>], iteration_bounds = array<i64: 1>, scalar_prefetch = 0 : i64, scratch_operands = 1 : i64, tpu.core_type = #tpu.core_type<tc>, window_params = [{transform_indices = @transform_0, window_bounds = array<i64: 32, 64>}, {pipeline_mode = #tpu.pipeline_mode<synchronous>, transform_indices = @transform_1, window_bounds = array<i64: 192, 128>}, {pipeline_mode = #tpu.pipeline_mode<synchronous>, transform_indices = @transform_2, window_bounds = array<i64: 1, 64>}, {pipeline_mode = #tpu.pipeline_mode<synchronous>, transform_indices = @transform_3, window_bounds = array<i64: 1, 64>}, {transform_indices = @transform_4, window_bounds = array<i64: 32, 128>}, {pipeline_mode = #tpu.pipeline_mode<synchronous>, transform_indices = @transform_5, window_bounds = array<i64: 1, 128>}, {pipeline_mode = #tpu.pipeline_mode<synchronous>, transform_indices = @transform_6, window_bounds = array<i64: 1, 128>}]} {
    %c0_i32 = arith.constant 0 : i32
    %0 = arith.cmpi eq, %arg0, %c0_i32 : i32
    %1 = arith.extui %0 : i1 to i32
    %c0_i32_0 = arith.constant 0 : i32
    %2 = arith.cmpi ne, %1, %c0_i32_0 : i32
    scf.if %2 {
      %cst_42 = arith.constant 0.000000e+00 : f32
      %55 = vector.broadcast %cst_42 : f32 to vector<1x128xf32>
      %c0_43 = arith.constant 0 : index
      %c0_44 = arith.constant 0 : index
      %56 = vector.load %arg6[%c0_43, %c0_44] : memref<1x128xf32, #tpu.memory_space<vmem>>, vector<1x128xf32>
      tpu.vector_store %arg6[%c0_43, %c0_44], %55 {strides = array<i32>} : memref<1x128xf32, #tpu.memory_space<vmem>>, vector<1x128xf32>,
      %cst_45 = arith.constant 0.000000e+00 : f32
      %57 = vector.broadcast %cst_45 : f32 to vector<1x128xf32>
      %c0_46 = arith.constant 0 : index
      %c0_47 = arith.constant 0 : index
      %58 = vector.load %arg7[%c0_46, %c0_47] : memref<1x128xf32, #tpu.memory_space<vmem>>, vector<1x128xf32>
      tpu.vector_store %arg7[%c0_46, %c0_47], %57 {strides = array<i32>} : memref<1x128xf32, #tpu.memory_space<vmem>>, vector<1x128xf32>,
    } else {
    }
    %c0 = arith.constant 0 : index
    %c0_1 = arith.constant 0 : index
    %3 = vector.load %arg1[%c0, %c0_1] : memref<32x64xf32, #tpu.memory_space<vmem>>, vector<32x64xf32>
    %c0_2 = arith.constant 0 : index
    %c0_3 = arith.constant 0 : index
    %4 = vector.load %arg3[%c0_2, %c0_3] : memref<1x64xf32, #tpu.memory_space<vmem>>, vector<1x64xf32>
    %5 = vector.broadcast %4 : vector<1x64xf32> to vector<32x64xf32>
    %6 = arith.mulf %3, %5 : vector<32x64xf32>
    %c0_4 = arith.constant 0 : index
    %c0_5 = arith.constant 0 : index
    %7 = vector.load %arg4[%c0_4, %c0_5] : memref<1x64xf32, #tpu.memory_space<vmem>>, vector<1x64xf32>
    %8 = vector.broadcast %7 : vector<1x64xf32> to vector<32x64xf32>
    %9 = arith.addf %6, %8 : vector<32x64xf32>
    %cst = arith.constant 2.000000e+01 : f32
    %10 = vector.broadcast %cst : f32 to vector<32x64xf32>
    %11 = arith.minimumf %9, %10 : vector<32x64xf32>
    %12 = math.exp %11 : vector<32x64xf32>
    %cst_6 = arith.constant 2.000000e+00 : f32
    %13 = vector.broadcast %cst_6 : f32 to vector<32x64xf32>
    %14 = arith.addf %12, %13 : vector<32x64xf32>
    %15 = arith.mulf %12, %14 : vector<32x64xf32>
    %cst_7 = arith.constant 2.000000e+00 : f32
    %16 = vector.broadcast %cst_7 : f32 to vector<32x64xf32>
    %17 = arith.addf %15, %16 : vector<32x64xf32>
    %18 = arith.divf %15, %17 : vector<32x64xf32>
    %19 = arith.mulf %9, %18 : vector<32x64xf32>
    %cst_8 = arith.constant 0.000000e+00 : f32
    %20 = vector.broadcast %cst_8 : f32 to vector<1x64xf32>
    %c0_9 = arith.constant 0 : index
    %c0_10 = arith.constant 0 : index
    %21 = vector.load %arg8[%c0_9, %c0_10] : memref<32x192xf32, #tpu.memory_space<vmem>>, vector<1x64xf32>
    tpu.vector_store %arg8[%c0_9, %c0_10], %20 {strides = array<i32>} : memref<32x192xf32, #tpu.memory_space<vmem>>, vector<1x64xf32>,
    %22 = vector.extract_strided_slice %19 {offsets = [0, 0], sizes = [15, 64], strides = [1, 1]} : vector<32x64xf32> to vector<15x64xf32>
    %c1 = arith.constant 1 : index
    %c0_11 = arith.constant 0 : index
    %23 = vector.load %arg8[%c1, %c0_11] : memref<32x192xf32, #tpu.memory_space<vmem>>, vector<15x64xf32>
    tpu.vector_store %arg8[%c1, %c0_11], %22 {strides = array<i32>} : memref<32x192xf32, #tpu.memory_space<vmem>>, vector<15x64xf32>,
    %24 = vector.extract_strided_slice %19 {offsets = [0, 0], sizes = [16, 64], strides = [1, 1]} : vector<32x64xf32> to vector<16x64xf32>
    %c0_12 = arith.constant 0 : index
    %c64 = arith.constant 64 : index
    %25 = vector.load %arg8[%c0_12, %c64] : memref<32x192xf32, #tpu.memory_space<vmem>>, vector<16x64xf32>
    tpu.vector_store %arg8[%c0_12, %c64], %24 {strides = array<i32>} : memref<32x192xf32, #tpu.memory_space<vmem>>, vector<16x64xf32>,
    %cst_13 = arith.constant 0.000000e+00 : f32
    %26 = vector.broadcast %cst_13 : f32 to vector<1x64xf32>
    %c15 = arith.constant 15 : index
    %c128 = arith.constant 128 : index
    %27 = vector.load %arg8[%c15, %c128] : memref<32x192xf32, #tpu.memory_space<vmem>>, vector<1x64xf32>
    tpu.vector_store %arg8[%c15, %c128], %26 {strides = array<i32>} : memref<32x192xf32, #tpu.memory_space<vmem>>, vector<1x64xf32>,
    %28 = vector.extract_strided_slice %19 {offsets = [1, 0], sizes = [15, 64], strides = [1, 1]} : vector<32x64xf32> to vector<15x64xf32>
    %c0_14 = arith.constant 0 : index
    %c128_15 = arith.constant 128 : index
    %29 = vector.load %arg8[%c0_14, %c128_15] : memref<32x192xf32, #tpu.memory_space<vmem>>, vector<15x64xf32>
    tpu.vector_store %arg8[%c0_14, %c128_15], %28 {strides = array<i32>} : memref<32x192xf32, #tpu.memory_space<vmem>>, vector<15x64xf32>,
    %cst_16 = arith.constant 0.000000e+00 : f32
    %30 = vector.broadcast %cst_16 : f32 to vector<1x64xf32>
    %c16 = arith.constant 16 : index
    %c0_17 = arith.constant 0 : index
    %31 = vector.load %arg8[%c16, %c0_17] : memref<32x192xf32, #tpu.memory_space<vmem>>, vector<1x64xf32>
    tpu.vector_store %arg8[%c16, %c0_17], %30 {strides = array<i32>} : memref<32x192xf32, #tpu.memory_space<vmem>>, vector<1x64xf32>,
    %32 = vector.extract_strided_slice %19 {offsets = [16, 0], sizes = [15, 64], strides = [1, 1]} : vector<32x64xf32> to vector<15x64xf32>
    %c17 = arith.constant 17 : index
    %c0_18 = arith.constant 0 : index
    %33 = vector.load %arg8[%c17, %c0_18] : memref<32x192xf32, #tpu.memory_space<vmem>>, vector<15x64xf32>
    tpu.vector_store %arg8[%c17, %c0_18], %32 {strides = array<i32>} : memref<32x192xf32, #tpu.memory_space<vmem>>, vector<15x64xf32>,
    %34 = vector.extract_strided_slice %19 {offsets = [16, 0], sizes = [16, 64], strides = [1, 1]} : vector<32x64xf32> to vector<16x64xf32>
    %c16_19 = arith.constant 16 : index
    %c64_20 = arith.constant 64 : index
    %35 = vector.load %arg8[%c16_19, %c64_20] : memref<32x192xf32, #tpu.memory_space<vmem>>, vector<16x64xf32>
    tpu.vector_store %arg8[%c16_19, %c64_20], %34 {strides = array<i32>} : memref<32x192xf32, #tpu.memory_space<vmem>>, vector<16x64xf32>,
    %cst_21 = arith.constant 0.000000e+00 : f32
    %36 = vector.broadcast %cst_21 : f32 to vector<1x64xf32>
    %c31 = arith.constant 31 : index
    %c128_22 = arith.constant 128 : index
    %37 = vector.load %arg8[%c31, %c128_22] : memref<32x192xf32, #tpu.memory_space<vmem>>, vector<1x64xf32>
    tpu.vector_store %arg8[%c31, %c128_22], %36 {strides = array<i32>} : memref<32x192xf32, #tpu.memory_space<vmem>>, vector<1x64xf32>,
    %38 = vector.extract_strided_slice %19 {offsets = [17, 0], sizes = [15, 64], strides = [1, 1]} : vector<32x64xf32> to vector<15x64xf32>
    %c16_23 = arith.constant 16 : index
    %c128_24 = arith.constant 128 : index
    %39 = vector.load %arg8[%c16_23, %c128_24] : memref<32x192xf32, #tpu.memory_space<vmem>>, vector<15x64xf32>
    tpu.vector_store %arg8[%c16_23, %c128_24], %38 {strides = array<i32>} : memref<32x192xf32, #tpu.memory_space<vmem>>, vector<15x64xf32>,
    %c0_25 = arith.constant 0 : index
    %c0_26 = arith.constant 0 : index
    %40 = vector.load %arg8[%c0_25, %c0_26] : memref<32x192xf32, #tpu.memory_space<vmem>>, vector<32x192xf32>
    %c0_27 = arith.constant 0 : index
    %c0_28 = arith.constant 0 : index
    %41 = vector.load %arg2[%c0_27, %c0_28] : memref<192x128xf32, #tpu.memory_space<vmem>>, vector<192x128xf32>
    %cst_29 = arith.constant dense<0.000000e+00> : vector<32x128xf32>
    %42 = tpu.matmul %40, %41, %cst_29 {dimension_numbers = #tpu.dot_dimension_numbers<[1], [0], [0], [1], [0, 0, 1, 1], [], []>} : vector<32x192xf32>, vector<192x128xf32>, vector<32x128xf32> -> vector<32x128xf32>
    %c0_30 = arith.constant 0 : index
    %c0_31 = arith.constant 0 : index
    %43 = vector.load %arg6[%c0_30, %c0_31] : memref<1x128xf32, #tpu.memory_space<vmem>>, vector<1x128xf32>
    %cst_32 = arith.constant dense<0.000000e+00> : vector<128xf32>
    %44 = vector.multi_reduction <add>, %42, %cst_32 [0] : vector<32x128xf32> to vector<128xf32>
    %45 = vector.shape_cast %44 : vector<128xf32> to vector<1x128xf32>
    %46 = arith.addf %43, %45 : vector<1x128xf32>
    %c0_33 = arith.constant 0 : index
    %c0_34 = arith.constant 0 : index
    %47 = vector.load %arg6[%c0_33, %c0_34] : memref<1x128xf32, #tpu.memory_space<vmem>>, vector<1x128xf32>
    tpu.vector_store %arg6[%c0_33, %c0_34], %46 {strides = array<i32>} : memref<1x128xf32, #tpu.memory_space<vmem>>, vector<1x128xf32>,
    %c0_35 = arith.constant 0 : index
    %c0_36 = arith.constant 0 : index
    %48 = vector.load %arg7[%c0_35, %c0_36] : memref<1x128xf32, #tpu.memory_space<vmem>>, vector<1x128xf32>
    %49 = arith.mulf %42, %42 : vector<32x128xf32>
    %cst_37 = arith.constant dense<0.000000e+00> : vector<128xf32>
    %50 = vector.multi_reduction <add>, %49, %cst_37 [0] : vector<32x128xf32> to vector<128xf32>
    %51 = vector.shape_cast %50 : vector<128xf32> to vector<1x128xf32>
    %52 = arith.addf %48, %51 : vector<1x128xf32>
    %c0_38 = arith.constant 0 : index
    %c0_39 = arith.constant 0 : index
    %53 = vector.load %arg7[%c0_38, %c0_39] : memref<1x128xf32, #tpu.memory_space<vmem>>, vector<1x128xf32>
    tpu.vector_store %arg7[%c0_38, %c0_39], %52 {strides = array<i32>} : memref<1x128xf32, #tpu.memory_space<vmem>>, vector<1x128xf32>,
    %c0_40 = arith.constant 0 : index
    %c0_41 = arith.constant 0 : index
    %54 = vector.load %arg5[%c0_40, %c0_41] : memref<32x128xf32, #tpu.memory_space<vmem>>, vector<32x128xf32>
    tpu.vector_store %arg5[%c0_40, %c0_41], %42 {strides = array<i32>} : memref<32x128xf32, #tpu.memory_space<vmem>>, vector<32x128xf32>,
    return
  }
  func.func @transform_0(%arg0: i32) -> (i32, i32) {
    %c0_i32 = arith.constant 0 : i32
    %c0_i32_0 = arith.constant 0 : i32
    return %arg0, %c0_i32 : i32, i32
  }
  func.func @transform_1(%arg0: i32) -> (i32, i32) {
    %c0_i32 = arith.constant 0 : i32
    %c0_i32_0 = arith.constant 0 : i32
    %c0_i32_1 = arith.constant 0 : i32
    return %c0_i32, %c0_i32_0 : i32, i32
  }
  func.func @transform_2(%arg0: i32) -> (i32, i32) {
    %c0_i32 = arith.constant 0 : i32
    %c0_i32_0 = arith.constant 0 : i32
    %c0_i32_1 = arith.constant 0 : i32
    return %c0_i32, %c0_i32_0 : i32, i32
  }
  func.func @transform_3(%arg0: i32) -> (i32, i32) {
    %c0_i32 = arith.constant 0 : i32
    %c0_i32_0 = arith.constant 0 : i32
    %c0_i32_1 = arith.constant 0 : i32
    return %c0_i32, %c0_i32_0 : i32, i32
  }
  func.func @transform_4(%arg0: i32) -> (i32, i32) {
    %c0_i32 = arith.constant 0 : i32
    %c0_i32_0 = arith.constant 0 : i32
    return %arg0, %c0_i32 : i32, i32
  }
  func.func @transform_5(%arg0: i32) -> (i32, i32) {
    %c0_i32 = arith.constant 0 : i32
    %c0_i32_0 = arith.constant 0 : i32
    %c0_i32_1 = arith.constant 0 : i32
    return %c0_i32, %c0_i32_0 : i32, i32
  }
  func.func @transform_6(%arg0: i32) -> (i32, i32) {
    %c0_i32 = arith.constant 0 : i32
    %c0_i32_0 = arith.constant 0 : i32
    %c0_i32_1 = arith.constant 0 : i32
    return %c0_i32, %c0_i32_0 : i32, i32
  }
}

module attributes {stable_mosaic.version = 11 : i64} {
  func.func @_fused_conv_kernel(%arg0: i32, %arg1: memref<16x128xf32, #tpu.memory_space<vmem>>, %arg2: memref<384x128xf32, #tpu.memory_space<vmem>>, %arg3: memref<1x128xf32, #tpu.memory_space<vmem>>, %arg4: memref<1x128xf32, #tpu.memory_space<vmem>>, %arg5: memref<1x128xf32, #tpu.memory_space<vmem>>, %arg6: memref<16x128xf32, #tpu.memory_space<vmem>>, %arg7: memref<1x128xf32, #tpu.memory_space<vmem>>, %arg8: memref<1x128xf32, #tpu.memory_space<vmem>>, %arg9: memref<16x128xf32, #tpu.memory_space<vmem>>, %arg10: memref<16x384xf32, #tpu.memory_space<vmem>>) attributes {dimension_semantics = [#tpu.dimension_semantics<parallel>], iteration_bounds = array<i64: 2>, scalar_prefetch = 0 : i64, scratch_operands = 1 : i64, tpu.core_type = #tpu.core_type<tc>, window_params = [{transform_indices = @transform_0, window_bounds = array<i64: 16, 128>}, {pipeline_mode = #tpu.pipeline_mode<synchronous>, transform_indices = @transform_1, window_bounds = array<i64: 384, 128>}, {pipeline_mode = #tpu.pipeline_mode<synchronous>, transform_indices = @transform_2, window_bounds = array<i64: 1, 128>}, {pipeline_mode = #tpu.pipeline_mode<synchronous>, transform_indices = @transform_3, window_bounds = array<i64: 1, 128>}, {pipeline_mode = #tpu.pipeline_mode<synchronous>, transform_indices = @transform_4, window_bounds = array<i64: 1, 128>}, {transform_indices = @transform_5, window_bounds = array<i64: 16, 128>}, {pipeline_mode = #tpu.pipeline_mode<synchronous>, transform_indices = @transform_6, window_bounds = array<i64: 1, 128>}, {pipeline_mode = #tpu.pipeline_mode<synchronous>, transform_indices = @transform_7, window_bounds = array<i64: 1, 128>}, {transform_indices = @transform_8, window_bounds = array<i64: 16, 128>}]} {
    %c0 = arith.constant 0 : index
    %c0_0 = arith.constant 0 : index
    %0 = vector.load %arg1[%c0, %c0_0] : memref<16x128xf32, #tpu.memory_space<vmem>>, vector<16x128xf32>
    %c0_1 = arith.constant 0 : index
    %c0_2 = arith.constant 0 : index
    %1 = vector.load %arg3[%c0_1, %c0_2] : memref<1x128xf32, #tpu.memory_space<vmem>>, vector<1x128xf32>
    %2 = vector.broadcast %1 : vector<1x128xf32> to vector<16x128xf32>
    %3 = arith.mulf %0, %2 : vector<16x128xf32>
    %c0_3 = arith.constant 0 : index
    %c0_4 = arith.constant 0 : index
    %4 = vector.load %arg4[%c0_3, %c0_4] : memref<1x128xf32, #tpu.memory_space<vmem>>, vector<1x128xf32>
    %5 = vector.broadcast %4 : vector<1x128xf32> to vector<16x128xf32>
    %6 = arith.addf %3, %5 : vector<16x128xf32>
    %cst = arith.constant 2.000000e+01 : f32
    %7 = vector.broadcast %cst : f32 to vector<16x128xf32>
    %8 = arith.minimumf %6, %7 : vector<16x128xf32>
    %9 = math.exp %8 : vector<16x128xf32>
    %cst_5 = arith.constant 2.000000e+00 : f32
    %10 = vector.broadcast %cst_5 : f32 to vector<16x128xf32>
    %11 = arith.addf %9, %10 : vector<16x128xf32>
    %12 = arith.mulf %9, %11 : vector<16x128xf32>
    %cst_6 = arith.constant 2.000000e+00 : f32
    %13 = vector.broadcast %cst_6 : f32 to vector<16x128xf32>
    %14 = arith.addf %12, %13 : vector<16x128xf32>
    %15 = arith.divf %12, %14 : vector<16x128xf32>
    %16 = arith.mulf %6, %15 : vector<16x128xf32>
    %cst_7 = arith.constant 0.000000e+00 : f32
    %17 = vector.broadcast %cst_7 : f32 to vector<1x128xf32>
    %c0_8 = arith.constant 0 : index
    %c0_9 = arith.constant 0 : index
    %18 = vector.load %arg10[%c0_8, %c0_9] : memref<16x384xf32, #tpu.memory_space<vmem>>, vector<1x128xf32>
    tpu.vector_store %arg10[%c0_8, %c0_9], %17 {strides = array<i32>} : memref<16x384xf32, #tpu.memory_space<vmem>>, vector<1x128xf32>,
    %19 = vector.extract_strided_slice %16 {offsets = [0, 0], sizes = [15, 128], strides = [1, 1]} : vector<16x128xf32> to vector<15x128xf32>
    %c1 = arith.constant 1 : index
    %c0_10 = arith.constant 0 : index
    %20 = vector.load %arg10[%c1, %c0_10] : memref<16x384xf32, #tpu.memory_space<vmem>>, vector<15x128xf32>
    tpu.vector_store %arg10[%c1, %c0_10], %19 {strides = array<i32>} : memref<16x384xf32, #tpu.memory_space<vmem>>, vector<15x128xf32>,
    %c0_11 = arith.constant 0 : index
    %c128 = arith.constant 128 : index
    %21 = vector.load %arg10[%c0_11, %c128] : memref<16x384xf32, #tpu.memory_space<vmem>>, vector<16x128xf32>
    tpu.vector_store %arg10[%c0_11, %c128], %16 {strides = array<i32>} : memref<16x384xf32, #tpu.memory_space<vmem>>, vector<16x128xf32>,
    %cst_12 = arith.constant 0.000000e+00 : f32
    %22 = vector.broadcast %cst_12 : f32 to vector<1x128xf32>
    %c15 = arith.constant 15 : index
    %c256 = arith.constant 256 : index
    %23 = vector.load %arg10[%c15, %c256] : memref<16x384xf32, #tpu.memory_space<vmem>>, vector<1x128xf32>
    tpu.vector_store %arg10[%c15, %c256], %22 {strides = array<i32>} : memref<16x384xf32, #tpu.memory_space<vmem>>, vector<1x128xf32>,
    %24 = vector.extract_strided_slice %16 {offsets = [1, 0], sizes = [15, 128], strides = [1, 1]} : vector<16x128xf32> to vector<15x128xf32>
    %c0_13 = arith.constant 0 : index
    %c256_14 = arith.constant 256 : index
    %25 = vector.load %arg10[%c0_13, %c256_14] : memref<16x384xf32, #tpu.memory_space<vmem>>, vector<15x128xf32>
    tpu.vector_store %arg10[%c0_13, %c256_14], %24 {strides = array<i32>} : memref<16x384xf32, #tpu.memory_space<vmem>>, vector<15x128xf32>,
    %c0_15 = arith.constant 0 : index
    %c0_16 = arith.constant 0 : index
    %26 = vector.load %arg10[%c0_15, %c0_16] : memref<16x384xf32, #tpu.memory_space<vmem>>, vector<16x384xf32>
    %c0_17 = arith.constant 0 : index
    %c0_18 = arith.constant 0 : index
    %27 = vector.load %arg2[%c0_17, %c0_18] : memref<384x128xf32, #tpu.memory_space<vmem>>, vector<384x128xf32>
    %cst_19 = arith.constant dense<0.000000e+00> : vector<16x128xf32>
    %28 = tpu.matmul %26, %27, %cst_19 {dimension_numbers = #tpu.dot_dimension_numbers<[1], [0], [0], [1], [0, 0, 1, 1], [], []>} : vector<16x384xf32>, vector<384x128xf32>, vector<16x128xf32> -> vector<16x128xf32>
    %c0_20 = arith.constant 0 : index
    %c0_21 = arith.constant 0 : index
    %29 = vector.load %arg5[%c0_20, %c0_21] : memref<1x128xf32, #tpu.memory_space<vmem>>, vector<1x128xf32>
    %30 = vector.broadcast %29 : vector<1x128xf32> to vector<16x128xf32>
    %31 = arith.addf %28, %30 : vector<16x128xf32>
    %c0_22 = arith.constant 0 : index
    %c0_23 = arith.constant 0 : index
    %32 = vector.load %arg6[%c0_22, %c0_23] : memref<16x128xf32, #tpu.memory_space<vmem>>, vector<16x128xf32>
    %c0_24 = arith.constant 0 : index
    %c0_25 = arith.constant 0 : index
    %33 = vector.load %arg7[%c0_24, %c0_25] : memref<1x128xf32, #tpu.memory_space<vmem>>, vector<1x128xf32>
    %34 = vector.broadcast %33 : vector<1x128xf32> to vector<16x128xf32>
    %35 = arith.mulf %32, %34 : vector<16x128xf32>
    %36 = arith.addf %31, %35 : vector<16x128xf32>
    %c0_26 = arith.constant 0 : index
    %c0_27 = arith.constant 0 : index
    %37 = vector.load %arg8[%c0_26, %c0_27] : memref<1x128xf32, #tpu.memory_space<vmem>>, vector<1x128xf32>
    %38 = vector.broadcast %37 : vector<1x128xf32> to vector<16x128xf32>
    %39 = arith.addf %36, %38 : vector<16x128xf32>
    %c0_28 = arith.constant 0 : index
    %c0_29 = arith.constant 0 : index
    %40 = vector.load %arg9[%c0_28, %c0_29] : memref<16x128xf32, #tpu.memory_space<vmem>>, vector<16x128xf32>
    tpu.vector_store %arg9[%c0_28, %c0_29], %39 {strides = array<i32>} : memref<16x128xf32, #tpu.memory_space<vmem>>, vector<16x128xf32>,
    return
  }
  func.func @transform_0(%arg0: i32) -> (i32, i32) {
    %c0_i32 = arith.constant 0 : i32
    %c0_i32_0 = arith.constant 0 : i32
    return %arg0, %c0_i32 : i32, i32
  }
  func.func @transform_1(%arg0: i32) -> (i32, i32) {
    %c0_i32 = arith.constant 0 : i32
    %c0_i32_0 = arith.constant 0 : i32
    %c0_i32_1 = arith.constant 0 : i32
    return %c0_i32, %c0_i32_0 : i32, i32
  }
  func.func @transform_2(%arg0: i32) -> (i32, i32) {
    %c0_i32 = arith.constant 0 : i32
    %c0_i32_0 = arith.constant 0 : i32
    %c0_i32_1 = arith.constant 0 : i32
    return %c0_i32, %c0_i32_0 : i32, i32
  }
  func.func @transform_3(%arg0: i32) -> (i32, i32) {
    %c0_i32 = arith.constant 0 : i32
    %c0_i32_0 = arith.constant 0 : i32
    %c0_i32_1 = arith.constant 0 : i32
    return %c0_i32, %c0_i32_0 : i32, i32
  }
  func.func @transform_4(%arg0: i32) -> (i32, i32) {
    %c0_i32 = arith.constant 0 : i32
    %c0_i32_0 = arith.constant 0 : i32
    %c0_i32_1 = arith.constant 0 : i32
    return %c0_i32, %c0_i32_0 : i32, i32
  }
  func.func @transform_5(%arg0: i32) -> (i32, i32) {
    %c0_i32 = arith.constant 0 : i32
    %c0_i32_0 = arith.constant 0 : i32
    return %arg0, %c0_i32 : i32, i32
  }
  func.func @transform_6(%arg0: i32) -> (i32, i32) {
    %c0_i32 = arith.constant 0 : i32
    %c0_i32_0 = arith.constant 0 : i32
    %c0_i32_1 = arith.constant 0 : i32
    return %c0_i32, %c0_i32_0 : i32, i32
  }
  func.func @transform_7(%arg0: i32) -> (i32, i32) {
    %c0_i32 = arith.constant 0 : i32
    %c0_i32_0 = arith.constant 0 : i32
    %c0_i32_1 = arith.constant 0 : i32
    return %c0_i32, %c0_i32_0 : i32, i32
  }
  func.func @transform_8(%arg0: i32) -> (i32, i32) {
    %c0_i32 = arith.constant 0 : i32
    %c0_i32_0 = arith.constant 0 : i32
    return %arg0, %c0_i32 : i32, i32
  }
}

</mosaic_0001>

<llo_original>
// kernel: tile.38
$region0: #{tile.38}
  #allocation0 [shape = 's32[1]{0}', space=sflag, size = 0x4, scoped, tag = 'scoped memory for tile.38']
  %s0 = inlined_call_operand.vmem [shape: f32[4], index: 0, kind: input, shape index: {}]
  %s1 = inlined_call_operand.vmem [shape: f32[16,4], index: 1, kind: output, shape index: {}]
  // Predicated region
  $region2: #{tile.38} parent=0 // pred_check
    _
  $region3: #{tile.38} parent=0 // pred_check_branch
    %3 = sbr.rel (0) target = $region5
  $region4: #{tile.38} parent=0 // pred_region
    _
  $region5: #{tile.38} parent=0 // pred_fallthru
    _
  %v4 = vld [vmem:[%s0] ss:$0 sm:$0xff]
  %5 = vst [vmem:[%s1] sm:$0xff] %v4
  %s6 = scalar_lea.vmem %s1, 8
  %7 = vst [vmem:[%s6] sm:$0xff] %v4

// kernel: tile.39
$region0: #{tile.39}
  %s0 = inlined_call_operand.vmem [shape: f32[16,4], index: 0, kind: input, shape index: {}]
  %s1 = inlined_call_operand.vmem [shape: f32[1,64], index: 1, kind: output, shape index: {}]
  $region1: #{tile.39} parent=0
    #allocation0 [shape = 'u8[4096]{0}', space=vmem, size = 0x1000, scoped, tag = 'scoped mem for output reshape']
    %v2 = vld [vmem:[%s0] sm:$0x1]
    %vm3 = vcmask 31744
    %4 = vst.msk [vmem:[#allocation0] sm:$0x1] %vm3, %v2
    %s5 = scalar_lea.vmem %s0, 15
    %v6 = vld [vmem:[%s5] sm:$0x1]
    %7 = vrot.lane.b32.xlu0 %v6, 60
    %v8 = vpop.permute.xlu0 %7
    %vm9 = vcmask 523744
    %10 = vst.msk [vmem:[#allocation0] sm:$0x1] %vm9, %v8
    %s11 = scalar_lea.vmem %s0, 14
    %v12 = vld [vmem:[%s11] sm:$0x1]
    %13 = vrot.lane.b32.xlu0 %v12, 56
    %v14 = vpop.permute.xlu0 %13
    %vm15 = vcmask 490944
    %16 = vst.msk [vmem:[#allocation0] sm:$0x1] %vm15, %v14
    %s17 = scalar_lea.vmem %s0, 13
    %v18 = vld [vmem:[%s17] sm:$0x1]
    %19 = vrot.lane.b32.xlu0 %v18, 52
    %v20 = vpop.permute.xlu0 %19
    %vm21 = vcmask 458144
    %22 = vst.msk [vmem:[#allocation0] sm:$0x1] %vm21, %v20
    %s23 = scalar_lea.vmem %s0, 12
    %v24 = vld [vmem:[%s23] sm:$0x1]
    %25 = vrot.lane.b32.xlu0 %v24, 48
    %v26 = vpop.permute.xlu0 %25
    %vm27 = vcmask 425344
    %28 = vst.msk [vmem:[#allocation0] sm:$0x1] %vm27, %v26
    %s29 = scalar_lea.vmem %s0, 11
    %v30 = vld [vmem:[%s29] sm:$0x1]
    %31 = vrot.lane.b32.xlu0 %v30, 44
    %v32 = vpop.permute.xlu0 %31
    %vm33 = vcmask 392544
    %34 = vst.msk [vmem:[#allocation0] sm:$0x1] %vm33, %v32
    %s35 = scalar_lea.vmem %s0, 10
    %v36 = vld [vmem:[%s35] sm:$0x1]
    %37 = vrot.lane.b32.xlu0 %v36, 40
    %v38 = vpop.permute.xlu0 %37
    %vm39 = vcmask 359744
    %40 = vst.msk [vmem:[#allocation0] sm:$0x1] %vm39, %v38
    %s41 = scalar_lea.vmem %s0, 9
    %v42 = vld [vmem:[%s41] sm:$0x1]
    %43 = vrot.lane.b32.xlu0 %v42, 36
    %v44 = vpop.permute.xlu0 %43
    %vm45 = vcmask 326944
    %46 = vst.msk [vmem:[#allocation0] sm:$0x1] %vm45, %v44
    %s47 = scalar_lea.vmem %s0, 8
    %v48 = vld [vmem:[%s47] sm:$0x1]
    %49 = vrot.lane.b32.xlu0 %v48, 32
    %v50 = vpop.permute.xlu0 %49
    %vm51 = vcmask 294144
    %52 = vst.msk [vmem:[#allocation0] sm:$0x1] %vm51, %v50
    %s53 = scalar_lea.vmem %s0, 7
    %v54 = vld [vmem:[%s53] sm:$0x1]
    %55 = vrot.lane.b32.xlu0 %v54, 28
    %v56 = vpop.permute.xlu0 %55
    %vm57 = vcmask 261344
    %58 = vst.msk [vmem:[#allocation0] sm:$0x1] %vm57, %v56
    %s59 = scalar_lea.vmem %s0, 6
    %v60 = vld [vmem:[%s59] sm:$0x1]
    %61 = vrot.lane.b32.xlu0 %v60, 24
    %v62 = vpop.permute.xlu0 %61
    %vm63 = vcmask 228544
    %64 = vst.msk [vmem:[#allocation0] sm:$0x1] %vm63, %v62
    %s65 = scalar_lea.vmem %s0, 5
    %v66 = vld [vmem:[%s65] sm:$0x1]
    %67 = vrot.lane.b32.xlu0 %v66, 20
    %v68 = vpop.permute.xlu0 %67
    %vm69 = vcmask 195744
    %70 = vst.msk [vmem:[#allocation0] sm:$0x1] %vm69, %v68
    %s71 = scalar_lea.vmem %s0, 4
    %v72 = vld [vmem:[%s71] sm:$0x1]
    %73 = vrot.lane.b32.xlu0 %v72, 16
    %v74 = vpop.permute.xlu0 %73
    %vm75 = vcmask 162944
    %76 = vst.msk [vmem:[#allocation0] sm:$0x1] %vm75, %v74
    %s77 = scalar_lea.vmem %s0, 3
    %v78 = vld [vmem:[%s77] sm:$0x1]
    %79 = vrot.lane.b32.xlu0 %v78, 12
    %v80 = vpop.permute.xlu0 %79
    %vm81 = vcmask 130144
    %82 = vst.msk [vmem:[#allocation0] sm:$0x1] %vm81, %v80
    %s83 = scalar_lea.vmem %s0, 2
    %v84 = vld [vmem:[%s83] sm:$0x1]
    %85 = vrot.lane.b32.xlu0 %v84, 8
    %v86 = vpop.permute.xlu0 %85
    %vm87 = vcmask 97344
    %88 = vst.msk [vmem:[#allocation0] sm:$0x1] %vm87, %v86
    %s89 = scalar_lea.vmem %s0, 1
    %v90 = vld [vmem:[%s89] sm:$0x1]
    %91 = vrot.lane.b32.xlu0 %v90, 4
    %v92 = vpop.permute.xlu0 %91
    %vm93 = vcmask 64544
    %94 = vst.msk [vmem:[#allocation0] sm:$0x1] %vm93, %v92
    %s96 = sshllo.u32 0, 1
    %v98 = vld [vmem:[#allocation0] sm:%s96]
    %s99 = sshllo.u32 0, 1
    %100 = vst [vmem:[%s1] sm:%s99] %v98

// kernel: residual_conv_forward.3
$region0: #{residual_conv_forward.3}
  #allocation0 [shape = 'u32[]', space=smem, size = 0x4, offset = 0x4, fixed_abs, tag = 'smem constant byte address 0x4 - core index']
  #allocation1 [shape = 'u32[144,128]{1,0:T(1,128)}', space=vmem, size = 0x12000, scoped, tag = 'internal scratch']
  #allocation2 [shape = 'f32[32,192]{1,0:T(8,128)}', space=vmem, size = 0x8000, scoped, tag = 'scratch operand']
  %s0 = inlined_call_operand.vmem [shape: f32[32,64], index: 0, kind: input, shape index: {}]
  %s1 = inlined_call_operand.vmem [shape: f32[192,128], index: 1, kind: input, shape index: {}]
  %s2 = inlined_call_operand.vmem [shape: f32[32,128], index: 2, kind: output, shape index: {0}]
  %s3 = inlined_call_operand.vmem [shape: f32[1,128], index: 3, kind: output, shape index: {1}]
  %s4 = inlined_call_operand.vmem [shape: f32[1,128], index: 4, kind: output, shape index: {2}]
  %s5 = inlined_call_operand.vmem [shape: f32[1,64], index: 5, kind: output, shape index: {3}]
  %s6 = inlined_call_operand.vmem [shape: f32[1,64], index: 6, kind: output, shape index: {4}]
  %7 = xla_tuple %s2, %s3, %s4, %s5, %s6
  %s8 = sld [smem:[#allocation0]]
  $region54: #{residual_conv_forward.3} parent=0
    _
  %s10 = ssub.s32 1, %s8
  %s11 = scalar_select 0, %s10, %s8
  // Predicated region
  $region2: #{residual_conv_forward.3} parent=0 // pred_check
    _
  $region3: #{residual_conv_forward.3} parent=0 // pred_check_branch
    %13 = sbr.rel (0) target = $region5
  $region4: #{residual_conv_forward.3} parent=0 // pred_region
    _
  $region5: #{residual_conv_forward.3} parent=0 // pred_fallthru
    _
  // Predicated region
  $region6: #{residual_conv_forward.3} parent=0 // pred_check
    _
  $region7: #{residual_conv_forward.3} parent=0 // pred_check_branch
    %15 = sbr.rel (0) target = $region9
  $region8: #{residual_conv_forward.3} parent=0 // pred_region
    _
  $region9: #{residual_conv_forward.3} parent=0 // pred_fallthru
    _
  %p16 = scmp.eq.s32.totalorder 0, 0
  // Predicated region
  $region10: #{residual_conv_forward.3} parent=0 // pred_check
    %p17 = pneg %p16
  $region11: #{residual_conv_forward.3} parent=0 // pred_check_branch
    %19 = sbr.rel (%p17) target = $region13
  $region12: #{residual_conv_forward.3} parent=0 // pred_region
    %20 = vst [vmem:[%s3] sm:$0x1] 0.0
    %21 = vst [vmem:[%s4] sm:$0x1] 0.0
    %vm22 = vcmask 516096
    %23 = vst.msk [vmem:[%s5] sm:$0x1] %vm22, 0.0
    %24 = vst.msk [vmem:[%s6] sm:$0x1] %vm22, 0.0
  $region13: #{residual_conv_forward.3} parent=0 // pred_fallthru
    _
  %v25 = vld [vmem:[%s0] sm:$0xff]
  %v26 = vld [vmem:[%s0 + $0x8] sm:$0xff]
  %v27 = vld [vmem:[%s0 + $0x10] sm:$0xff]
  %v28 = vld [vmem:[%s0 + $0x18] sm:$0xff]
  %v29 = vld [vmem:[%s5] sm:$0x1]
  %vm30 = vcmask 523264
  %v31 = vsel %vm30, %v25, 0.0
  %v32 = vsel %vm30, %v26, 0.0
  %v33 = vadd.f32 %v31, %v32
  %v34 = vsel %vm30, %v27, 0.0
  %v35 = vadd.f32 %v33, %v34
  %v36 = vsel %vm30, %v28, 0.0
  %v37 = vadd.f32 %v35, %v36
  %v38 = vrot.slane %v37, 4
  %v39 = vadd.f32 %v37, %v38
  %v40 = vrot.slane %v39, 2
  %v41 = vadd.f32 %v39, %v40
  %v42 = vrot.slane %v41, 1
  %v43 = vadd.f32 %v41, %v42
  %v44 = vadd.f32 %v29, %v43
  %vm45 = vcmask 516096
  %46 = vst.msk [vmem:[%s5] sm:$0x1] %vm45, %v44
  %v47 = vld [vmem:[%s6] sm:$0x1]
  %v48 = vmul.f32 %v25, %v25
  %v49 = vmul.f32 %v26, %v26
  %v50 = vmul.f32 %v27, %v27
  %v51 = vmul.f32 %v28, %v28
  %v52 = vsel %vm30, %v48, 0.0
  %v53 = vsel %vm30, %v49, 0.0
  %v54 = vadd.f32 %v52, %v53
  %v55 = vsel %vm30, %v50, 0.0
  %v56 = vadd.f32 %v54, %v55
  %v57 = vsel %vm30, %v51, 0.0
  %v58 = vadd.f32 %v56, %v57
  %v59 = vrot.slane %v58, 4
  %v60 = vadd.f32 %v58, %v59
  %v61 = vrot.slane %v60, 2
  %v62 = vadd.f32 %v60, %v61
  %v63 = vrot.slane %v62, 1
  %v64 = vadd.f32 %v62, %v63
  %v65 = vadd.f32 %v47, %v64
  %66 = vst.msk [vmem:[%s6] sm:$0x1] %vm45, %v65
  %67 = vst.msk [vmem:[#allocation2] sm:$0x1] %vm45, 0.0
  %vm70 = vcmask 1040384
  %v71 = vrot.slane %v25, 7
  %v72 = vrot.slane %v26, 7
  %v73 = vsel %vm70, %v71, %v72
  %vm76 = vcmask 523265
  %77 = vst.msk [vmem:[#allocation2] sm:$0xfe] %vm76, %v71
  %78 = vst.msk [vmem:[#allocation2 + $0x10] sm:$0xff] %vm30, %v73
  %79 = vrot.lane.b32.xlu0 %v25, 64
  %v80 = vpop.permute.xlu0 %79
  %81 = vrot.lane.b32.xlu0 %v26, 64
  %v82 = vpop.permute.xlu0 %81
  %vm85 = vcmask 1048064
  %86 = vst.msk [vmem:[#allocation2] sm:$0xff] %vm85, %v80
  %87 = vst.msk [vmem:[#allocation2 + $0x10] sm:$0xff] %vm85, %v82
  %88 = vst.msk [vmem:[#allocation2 + $0x1f] sm:$0x1] %vm45, 0.0
  %vm89 = vcmask 1046528
  %v90 = vrot.slane %v25, 1
  %v91 = vrot.slane %v26, 1
  %v92 = vsel %vm89, %v90, %v91
  %95 = vst.msk [vmem:[#allocation2 + $0x8] sm:$0xff] %vm30, %v92
  %vm96 = vcmask 522240
  %97 = vst.msk [vmem:[#allocation2 + $0x18] sm:$0x7f] %vm96, %v91
  %98 = vst.msk [vmem:[#allocation2 + $0x20] sm:$0x1] %vm45, 0.0
  %v101 = vrot.slane %v27, 7
  %v102 = vrot.slane %v28, 7
  %v103 = vsel %vm70, %v101, %v102
  %106 = vst.msk [vmem:[#allocation2 + $0x20] sm:$0xfe] %vm76, %v101
  %107 = vst.msk [vmem:[#allocation2 + $0x30] sm:$0xff] %vm30, %v103
  %108 = vrot.lane.b32.xlu0 %v27, 64
  %v109 = vpop.permute.xlu0 %108
  %110 = vrot.lane.b32.xlu0 %v28, 64
  %v111 = vpop.permute.xlu0 %110
  %114 = vst.msk [vmem:[#allocation2 + $0x20] sm:$0xff] %vm85, %v109
  %115 = vst.msk [vmem:[#allocation2 + $0x30] sm:$0xff] %vm85, %v111
  %116 = vst.msk [vmem:[#allocation2 + $0x3f] sm:$0x1] %vm45, 0.0
  %v117 = vrot.slane %v27, 1
  %v118 = vrot.slane %v28, 1
  %v119 = vsel %vm89, %v117, %v118
  %122 = vst.msk [vmem:[#allocation2 + $0x28] sm:$0xff] %vm30, %v119
  %123 = vst.msk [vmem:[#allocation2 + $0x38] sm:$0x7f] %vm96, %v118
  %v124 = vld [vmem:[#allocation2] sm:$0xff]
  %v125 = vld [vmem:[#allocation2 + $0x8] sm:$0xff]
  %v126 = vld [vmem:[#allocation2 + $0x10] sm:$0xff]
  %v127 = vld [vmem:[#allocation2 + $0x18] sm:$0xff]
  %v128 = vld [vmem:[#allocation2 + $0x20] sm:$0xff]
  %v129 = vld [vmem:[#allocation2 + $0x28] sm:$0xff]
  %v130 = vld [vmem:[#allocation2 + $0x30] sm:$0xff]
  %v131 = vld [vmem:[#allocation2 + $0x38] sm:$0xff]
  %v132 = vld [vmem:[%s1] sm:$0xff]
  %v133 = vld [vmem:[%s1 + $0x8] sm:$0xff]
  %v134 = vld [vmem:[%s1 + $0x10] sm:$0xff]
  %v135 = vld [vmem:[%s1 + $0x18] sm:$0xff]
  %v136 = vld [vmem:[%s1 + $0x20] sm:$0xff]
  %v137 = vld [vmem:[%s1 + $0x28] sm:$0xff]
  %v138 = vld [vmem:[%s1 + $0x30] sm:$0xff]
  %v139 = vld [vmem:[%s1 + $0x38] sm:$0xff]
  %v140 = vld [vmem:[%s1 + $0x40] sm:$0xff]
  %v141 = vld [vmem:[%s1 + $0x48] sm:$0xff]
  %v142 = vld [vmem:[%s1 + $0x50] sm:$0xff]
  %v143 = vld [vmem:[%s1 + $0x58] sm:$0xff]
  %v144 = vld [vmem:[%s1 + $0x60] sm:$0xff]
  %v145 = vld [vmem:[%s1 + $0x68] sm:$0xff]
  %v146 = vld [vmem:[%s1 + $0x70] sm:$0xff]
  %v147 = vld [vmem:[%s1 + $0x78] sm:$0xff]
  %v148 = vld [vmem:[%s1 + $0x80] sm:$0xff]
  %v149 = vld [vmem:[%s1 + $0x88] sm:$0xff]
  %v150 = vld [vmem:[%s1 + $0x90] sm:$0xff]
  %v151 = vld [vmem:[%s1 + $0x98] sm:$0xff]
  %v152 = vld [vmem:[%s1 + $0xa0] sm:$0xff]
  %v153 = vld [vmem:[%s1 + $0xa8] sm:$0xff]
  %v154 = vld [vmem:[%s1 + $0xb0] sm:$0xff]
  %v155 = vld [vmem:[%s1 + $0xb8] sm:$0xff]
  %v157 = vsel %vm30, %v125, 0
  %v160 = vsel %vm30, %v127, 0
  %v163 = vsel %vm30, %v129, 0
  %v166 = vsel %vm30, %v131, 0
  %168 = vmatprep.subr.mxu0 0.0
  %169 = vmatpush1.msra.mxu0 %v132
  %170 = vmatprep.subr.mxu0 0.0
  %171 = vmatpush1.msra.mxu0 %v133
  %172 = vmatprep.subr.mxu0 0.0
  %173 = vmatpush1.msra.mxu0 %v134
  %174 = vmatprep.subr.mxu0 0.0
  %175 = vmatpush1.msra.mxu0 %v135
  %176 = vmatprep.subr.mxu0 0.0
  %177 = vmatpush1.msra.mxu0 %v136
  %178 = vmatprep.subr.mxu0 0.0
  %179 = vmatpush1.msra.mxu0 %v137
  %180 = vmatprep.subr.mxu0 0.0
  %181 = vmatpush1.msra.mxu0 %v138
  %182 = vmatprep.subr.mxu0 0.0
  %183 = vmatpush1.msra.mxu0 %v139
  %184 = vmatprep.subr.mxu0 0.0
  %185 = vmatpush1.msra.mxu0 %v140
  %186 = vmatprep.subr.mxu0 0.0
  %187 = vmatpush1.msra.mxu0 %v141
  %188 = vmatprep.subr.mxu0 0.0
  %189 = vmatpush1.msra.mxu0 %v142
  %190 = vmatprep.subr.mxu0 0.0
  %191 = vmatpush1.msra.mxu0 %v143
  %192 = vmatprep.subr.mxu0 0.0
  %193 = vmatpush1.msra.mxu0 %v144
  %194 = vmatprep.subr.mxu0 0.0
  %195 = vmatpush1.msra.mxu0 %v145
  %196 = vmatprep.subr.mxu0 0.0
  %197 = vmatpush1.msra.mxu0 %v146
  %198 = vmatprep.subr.mxu0 0.0
  %199 = vmatpush1.msra.mxu0 %v147
  %200 = vmatprep.subr.mxu0 0.0
  %201 = vmatpush1.msra.mxu0 %v148
  %202 = vmatprep.subr.mxu0 0.0
  %203 = vmatpush1.msra.mxu0 %v149
  %204 = vmatprep.subr.mxu0 0.0
  %205 = vmatpush1.msra.mxu0 %v150
  %206 = vmatprep.subr.mxu0 0.0
  %207 = vmatpush1.msra.mxu0 %v151
  %208 = vmatprep.subr.mxu0 0.0
  %209 = vmatpush1.msra.mxu0 %v152
  %210 = vmatprep.subr.mxu0 0.0
  %211 = vmatpush1.msra.mxu0 %v153
  %212 = vmatprep.subr.mxu0 0.0
  %213 = vmatpush1.msra.mxu0 %v154
  %214 = vmatprep.subr.mxu0 0.0
  %215 = vmatpush1.msra.mxu0 %v155
  %216 = vmatprep.subr.mxu0 0.0
  %217 = vmatpush1.msra.mxu0 0.0
  %218 = vmatprep.subr.mxu0 0.0
  %219 = vmatpush1.msra.mxu0 0.0
  %220 = vmatprep.subr.mxu0 0.0
  %221 = vmatpush1.msra.mxu0 0.0
  %222 = vmatprep.subr.mxu0 0.0
  %223 = vmatpush1.msra.mxu0 0.0
  %224 = vmatprep.subr.mxu0 0.0
  %225 = vmatpush1.msra.mxu0 0.0
  %226 = vmatprep.subr.mxu0 0.0
  %227 = vmatpush1.msra.mxu0 0.0
  %228 = vmatprep.subr.mxu0 0.0
  %229 = vmatpush1.msra.mxu0 0.0
  %230 = vmatprep.subr.mxu0 0.0
  %231 = vmatpush1.msra.mxu0 0.0
  %232 = vmatprep.mubr.f32.mxu0 %v157
  %233 = vmatmul.mubr.f32.gmra.mrb[0].mxu0 %v124
  %v234 = vpop.f32.mrb[0].mxu0
  %v235 = vadd.f32 0.0, %v234
  %v236 = vpop.f32.mrb[0].mxu0
  %237 = vmatprep.mubr.f32.mxu0 %v160
  %238 = vmatmul.mubr.f32.gmra.mrb[0].mxu0 %v126
  %v239 = vpop.f32.mrb[0].mxu0
  %v240 = vadd.f32 0.0, %v239
  %v241 = vpop.f32.mrb[0].mxu0
  %242 = vmatprep.mubr.f32.mxu0 %v163
  %243 = vmatmul.mubr.f32.gmra.mrb[0].mxu0 %v128
  %v244 = vpop.f32.mrb[0].mxu0
  %v245 = vadd.f32 0.0, %v244
  %v246 = vpop.f32.mrb[0].mxu0
  %247 = vmatprep.mubr.f32.mxu0 %v166
  %248 = vmatmul.mubr.f32.gmra.mrb[0].mxu0 %v130
  %v249 = vpop.f32.mrb[0].mxu0
  %v250 = vadd.f32 0.0, %v249
  %v251 = vpop.f32.mrb[0].mxu0
  %252 = vdwg.mxu0
  %v253 = vld [vmem:[%s3] sm:$0x1]
  %v254 = vadd.f32 %v235, %v240
  %v255 = vadd.f32 %v254, %v245
  %v256 = vadd.f32 %v255, %v250
  %v257 = vrot.slane %v256, 4
  %v258 = vadd.f32 %v256, %v257
  %v259 = vrot.slane %v258, 2
  %v260 = vadd.f32 %v258, %v259
  %v261 = vrot.slane %v260, 1
  %v262 = vadd.f32 %v260, %v261
  %v263 = vadd.f32 %v253, %v262
  %264 = vst [vmem:[%s3] sm:$0x1] %v263
  %v265 = vld [vmem:[%s4] sm:$0x1]
  %v266 = vmul.f32 %v235, %v235
  %v267 = vmul.f32 %v240, %v240
  %v268 = vmul.f32 %v245, %v245
  %v269 = vmul.f32 %v250, %v250
  %v270 = vadd.f32 %v266, %v267
  %v271 = vadd.f32 %v270, %v268
  %v272 = vadd.f32 %v271, %v269
  %v273 = vrot.slane %v272, 4
  %v274 = vadd.f32 %v272, %v273
  %v275 = vrot.slane %v274, 2
  %v276 = vadd.f32 %v274, %v275
  %v277 = vrot.slane %v276, 1
  %v278 = vadd.f32 %v276, %v277
  %v279 = vadd.f32 %v265, %v278
  %280 = vst [vmem:[%s4] sm:$0x1] %v279
  %281 = vst [vmem:[%s2] sm:$0xff] %v235
  %282 = vst [vmem:[%s2 + $0x8] sm:$0xff] %v240
  %283 = vst [vmem:[%s2 + $0x10] sm:$0xff] %v245
  %284 = vst [vmem:[%s2 + $0x18] sm:$0xff] %v250
  // Predicated region
  $region14: #{residual_conv_forward.3} parent=0 // pred_check
    _
  $region15: #{residual_conv_forward.3} parent=0 // pred_check_branch
    %286 = sbr.rel (0) target = $region17
  $region16: #{residual_conv_forward.3} parent=0 // pred_region
    _
  $region17: #{residual_conv_forward.3} parent=0 // pred_fallthru
    _
  // Predicated region
  $region18: #{residual_conv_forward.3} parent=0 // pred_check
    _
  $region19: #{residual_conv_forward.3} parent=0 // pred_check_branch
    %288 = sbr.rel (0) target = $region21
  $region20: #{residual_conv_forward.3} parent=0 // pred_region
    _
  $region21: #{residual_conv_forward.3} parent=0 // pred_fallthru
    _
  // Predicated region
  $region22: #{residual_conv_forward.3} parent=0 // pred_check
    _
  $region23: #{residual_conv_forward.3} parent=0 // pred_check_branch
    %290 = sbr.rel (0) target = $region25
  $region24: #{residual_conv_forward.3} parent=0 // pred_region
    _
  $region25: #{residual_conv_forward.3} parent=0 // pred_fallthru
    _
  // Predicated region
  $region26: #{residual_conv_forward.3} parent=0 // pred_check
    _
  $region27: #{residual_conv_forward.3} parent=0 // pred_check_branch
    %292 = sbr.rel (0) target = $region29
  $region28: #{residual_conv_forward.3} parent=0 // pred_region
    _
  $region29: #{residual_conv_forward.3} parent=0 // pred_fallthru
    _
  // Predicated region
  $region30: #{residual_conv_forward.3} parent=0 // pred_check
    _
  $region31: #{residual_conv_forward.3} parent=0 // pred_check_branch
    %294 = sbr.rel (0) target = $region33
  $region32: #{residual_conv_forward.3} parent=0 // pred_region
    _
  $region33: #{residual_conv_forward.3} parent=0 // pred_fallthru
    _
  // Predicated region
  $region34: #{residual_conv_forward.3} parent=0 // pred_check
    _
  $region35: #{residual_conv_forward.3} parent=0 // pred_check_branch
    %296 = sbr.rel (0) target = $region37
  $region36: #{residual_conv_forward.3} parent=0 // pred_region
    _
  $region37: #{residual_conv_forward.3} parent=0 // pred_fallthru
    _
  // Predicated region
  $region38: #{residual_conv_forward.3} parent=0 // pred_check
    _
  $region39: #{residual_conv_forward.3} parent=0 // pred_check_branch
    %298 = sbr.rel (0) target = $region41
  $region40: #{residual_conv_forward.3} parent=0 // pred_region
    _
  $region41: #{residual_conv_forward.3} parent=0 // pred_fallthru
    _
  // Predicated region
  $region42: #{residual_conv_forward.3} parent=0 // pred_check
    _
  $region43: #{residual_conv_forward.3} parent=0 // pred_check_branch
    %300 = sbr.rel (0) target = $region45
  $region44: #{residual_conv_forward.3} parent=0 // pred_region
    _
  $region45: #{residual_conv_forward.3} parent=0 // pred_fallthru
    _
  // Predicated region
  $region46: #{residual_conv_forward.3} parent=0 // pred_check
    _
  $region47: #{residual_conv_forward.3} parent=0 // pred_check_branch
    %302 = sbr.rel (0) target = $region49
  $region48: #{residual_conv_forward.3} parent=0 // pred_region
    _
  $region49: #{residual_conv_forward.3} parent=0 // pred_fallthru
    _
  // Predicated region
  $region50: #{residual_conv_forward.3} parent=0 // pred_check
    _
  $region51: #{residual_conv_forward.3} parent=0 // pred_check_branch
    %304 = sbr.rel (0) target = $region53
  $region52: #{residual_conv_forward.3} parent=0 // pred_region
    _
  $region53: #{residual_conv_forward.3} parent=0 // pred_fallthru
    _

// kernel: tile.48
$region0: #{tile.48}
  #allocation0 [shape = 's32[1]{0}', space=sflag, size = 0x4, scoped, tag = 'scoped memory for tile.48']
  %s0 = inlined_call_operand.vmem [shape: f32[8], index: 0, kind: input, shape index: {}]
  %s1 = inlined_call_operand.vmem [shape: f32[16,8], index: 1, kind: output, shape index: {}]
  // Predicated region
  $region2: #{tile.48} parent=0 // pred_check
    _
  $region3: #{tile.48} parent=0 // pred_check_branch
    %3 = sbr.rel (0) target = $region5
  $region4: #{tile.48} parent=0 // pred_region
    _
  $region5: #{tile.48} parent=0 // pred_fallthru
    _
  %v4 = vld [vmem:[%s0] ss:$0 sm:$0xff]
  %5 = vst [vmem:[%s1] sm:$0xff] %v4
  %s6 = scalar_lea.vmem %s1, 8
  %7 = vst [vmem:[%s6] sm:$0xff] %v4

// kernel: residual_conv_forward.4
$region0: #{residual_conv_forward.4}
  #allocation0 [shape = 'u32[]', space=smem, size = 0x4, offset = 0x4, fixed_abs, tag = 'smem constant byte address 0x4 - core index']
  #allocation1 [shape = 'u32[144,128]{1,0:T(1,128)}', space=vmem, size = 0x12000, scoped, tag = 'internal scratch']
  #allocation2 [shape = 'f32[32,192]{1,0:T(8,128)}', space=vmem, size = 0x8000, scoped, tag = 'scratch operand']
  %s0 = inlined_call_operand.vmem [shape: f32[32,64], index: 0, kind: input, shape index: {}]
  %s1 = inlined_call_operand.vmem [shape: f32[192,128], index: 1, kind: input, shape index: {}]
  %s2 = inlined_call_operand.vmem [shape: f32[1,64], index: 2, kind: input, shape index: {}]
  %s3 = inlined_call_operand.vmem [shape: f32[1,64], index: 3, kind: input, shape index: {}]
  %s4 = inlined_call_operand.vmem [shape: f32[32,128], index: 4, kind: output, shape index: {0}]
  %s5 = inlined_call_operand.vmem [shape: f32[1,128], index: 5, kind: output, shape index: {1}]
  %s6 = inlined_call_operand.vmem [shape: f32[1,128], index: 6, kind: output, shape index: {2}]
  %7 = xla_tuple %s4, %s5, %s6
  %s8 = sld [smem:[#allocation0]]
  $region46: #{residual_conv_forward.4} parent=0
    _
  %s10 = ssub.s32 1, %s8
  %s11 = scalar_select 0, %s10, %s8
  // Predicated region
  $region2: #{residual_conv_forward.4} parent=0 // pred_check
    _
  $region3: #{residual_conv_forward.4} parent=0 // pred_check_branch
    %13 = sbr.rel (0) target = $region5
  $region4: #{residual_conv_forward.4} parent=0 // pred_region
    _
  $region5: #{residual_conv_forward.4} parent=0 // pred_fallthru
    _
  // Predicated region
  $region6: #{residual_conv_forward.4} parent=0 // pred_check
    _
  $region7: #{residual_conv_forward.4} parent=0 // pred_check_branch
    %15 = sbr.rel (0) target = $region9
  $region8: #{residual_conv_forward.4} parent=0 // pred_region
    _
  $region9: #{residual_conv_forward.4} parent=0 // pred_fallthru
    _
  // Predicated region
  $region10: #{residual_conv_forward.4} parent=0 // pred_check
    _
  $region11: #{residual_conv_forward.4} parent=0 // pred_check_branch
    %17 = sbr.rel (0) target = $region13
  $region12: #{residual_conv_forward.4} parent=0 // pred_region
    _
  $region13: #{residual_conv_forward.4} parent=0 // pred_fallthru
    _
  // Predicated region
  $region14: #{residual_conv_forward.4} parent=0 // pred_check
    _
  $region15: #{residual_conv_forward.4} parent=0 // pred_check_branch
    %19 = sbr.rel (0) target = $region17
  $region16: #{residual_conv_forward.4} parent=0 // pred_region
    _
  $region17: #{residual_conv_forward.4} parent=0 // pred_fallthru
    _
  %p20 = scmp.eq.s32.totalorder 0, 0
  // Predicated region
  $region18: #{residual_conv_forward.4} parent=0 // pred_check
    %p21 = pneg %p20
  $region19: #{residual_conv_forward.4} parent=0 // pred_check_branch
    %23 = sbr.rel (%p21) target = $region21
  $region20: #{residual_conv_forward.4} parent=0 // pred_region
    %24 = vst [vmem:[%s5] sm:$0x1] 0.0
    %25 = vst [vmem:[%s6] sm:$0x1] 0.0
  $region21: #{residual_conv_forward.4} parent=0 // pred_fallthru
    _
  %v26 = vld [vmem:[%s0] sm:$0xff]
  %v27 = vld [vmem:[%s0 + $0x8] sm:$0xff]
  %v28 = vld [vmem:[%s0 + $0x10] sm:$0xff]
  %v29 = vld [vmem:[%s0 + $0x18] sm:$0xff]
  %v30 = vld [vmem:[%s2] sm:$0x1]
  %v32 = vlaneseq
  %v33 = vshrl.u32 %v32, 7
  %v34 = vsub.s32 0, %v33
  %v35 = vrot.slane %v30, %v34
  %v37 = vmul.f32 %v26, %v35
  %v38 = vmul.f32 %v27, %v35
  %v39 = vmul.f32 %v28, %v35
  %v40 = vmul.f32 %v29, %v35
  %v41 = vld [vmem:[%s3] sm:$0x1]
  %v43 = vlaneseq
  %v44 = vshrl.u32 %v43, 7
  %v45 = vsub.s32 0, %v44
  %v46 = vrot.slane %v41, %v45
  %v48 = vadd.f32 %v37, %v46
  %v49 = vadd.f32 %v38, %v46
  %v50 = vadd.f32 %v39, %v46
  %v51 = vadd.f32 %v40, %v46
  %v52 = vmin.f32 %v48, 20.0
  %v53 = vmin.f32 %v49, 20.0
  %v54 = vmin.f32 %v50, 20.0
  %v55 = vmin.f32 %v51, 20.0
  %v56 = vmul.f32 %v52, 1.442695
  %v57 = vpow.pop %v56
  %v58 = vmul.f32 %v53, 1.442695
  %v59 = vpow.pop %v58
  %v60 = vmul.f32 %v54, 1.442695
  %v61 = vpow.pop %v60
  %v62 = vmul.f32 %v55, 1.442695
  %v63 = vpow.pop %v62
  %v64 = vadd.f32 %v57, 2.0
  %v65 = vadd.f32 %v59, 2.0
  %v66 = vadd.f32 %v61, 2.0
  %v67 = vadd.f32 %v63, 2.0
  %v68 = vmul.f32 %v57, %v64
  %v69 = vmul.f32 %v59, %v65
  %v70 = vmul.f32 %v61, %v66
  %v71 = vmul.f32 %v63, %v67
  %v72 = vadd.f32 %v68, 2.0
  %v73 = vadd.f32 %v69, 2.0
  %v74 = vadd.f32 %v70, 2.0
  %v75 = vadd.f32 %v71, 2.0
  %v76 = vrcp.pop %v72
  %v77 = vmul.f32 %v68, %v76
  %v78 = vrcp.pop %v73
  %v79 = vmul.f32 %v69, %v78
  %v80 = vrcp.pop %v74
  %v81 = vmul.f32 %v70, %v80
  %v82 = vrcp.pop %v75
  %v83 = vmul.f32 %v71, %v82
  %v84 = vmul.f32 %v48, %v77
  %v85 = vmul.f32 %v49, %v79
  %v86 = vmul.f32 %v50, %v81
  %v87 = vmul.f32 %v51, %v83
  %vm88 = vcmask 516096
  %89 = vst.msk [vmem:[#allocation2] sm:$0x1] %vm88, 0.0
  %vm92 = vcmask 1040384
  %v93 = vrot.slane %v84, 7
  %v94 = vrot.slane %v85, 7
  %v95 = vsel %vm92, %v93, %v94
  %vm98 = vcmask 523265
  %99 = vst.msk [vmem:[#allocation2] sm:$0xfe] %vm98, %v93
  %vm100 = vcmask 523264
  %101 = vst.msk [vmem:[#allocation2 + $0x10] sm:$0xff] %vm100, %v95
  %102 = vrot.lane.b32.xlu0 %v84, 64
  %v103 = vpop.permute.xlu0 %102
  %104 = vrot.lane.b32.xlu0 %v85, 64
  %v105 = vpop.permute.xlu0 %104
  %vm108 = vcmask 1048064
  %109 = vst.msk [vmem:[#allocation2] sm:$0xff] %vm108, %v103
  %110 = vst.msk [vmem:[#allocation2 + $0x10] sm:$0xff] %vm108, %v105
  %111 = vst.msk [vmem:[#allocation2 + $0x1f] sm:$0x1] %vm88, 0.0
  %vm112 = vcmask 1046528
  %v113 = vrot.slane %v84, 1
  %v114 = vrot.slane %v85, 1
  %v115 = vsel %vm112, %v113, %v114
  %118 = vst.msk [vmem:[#allocation2 + $0x8] sm:$0xff] %vm100, %v115
  %vm119 = vcmask 522240
  %120 = vst.msk [vmem:[#allocation2 + $0x18] sm:$0x7f] %vm119, %v114
  %121 = vst.msk [vmem:[#allocation2 + $0x20] sm:$0x1] %vm88, 0.0
  %v124 = vrot.slane %v86, 7
  %v125 = vrot.slane %v87, 7
  %v126 = vsel %vm92, %v124, %v125
  %129 = vst.msk [vmem:[#allocation2 + $0x20] sm:$0xfe] %vm98, %v124
  %130 = vst.msk [vmem:[#allocation2 + $0x30] sm:$0xff] %vm100, %v126
  %131 = vrot.lane.b32.xlu0 %v86, 64
  %v132 = vpop.permute.xlu0 %131
  %133 = vrot.lane.b32.xlu0 %v87, 64
  %v134 = vpop.permute.xlu0 %133
  %137 = vst.msk [vmem:[#allocation2 + $0x20] sm:$0xff] %vm108, %v132
  %138 = vst.msk [vmem:[#allocation2 + $0x30] sm:$0xff] %vm108, %v134
  %139 = vst.msk [vmem:[#allocation2 + $0x3f] sm:$0x1] %vm88, 0.0
  %v140 = vrot.slane %v86, 1
  %v141 = vrot.slane %v87, 1
  %v142 = vsel %vm112, %v140, %v141
  %145 = vst.msk [vmem:[#allocation2 + $0x28] sm:$0xff] %vm100, %v142
  %146 = vst.msk [vmem:[#allocation2 + $0x38] sm:$0x7f] %vm119, %v141
  %v147 = vld [vmem:[#allocation2] sm:$0xff]
  %v148 = vld [vmem:[#allocation2 + $0x8] sm:$0xff]
  %v149 = vld [vmem:[#allocation2 + $0x10] sm:$0xff]
  %v150 = vld [vmem:[#allocation2 + $0x18] sm:$0xff]
  %v151 = vld [vmem:[#allocation2 + $0x20] sm:$0xff]
  %v152 = vld [vmem:[#allocation2 + $0x28] sm:$0xff]
  %v153 = vld [vmem:[#allocation2 + $0x30] sm:$0xff]
  %v154 = vld [vmem:[#allocation2 + $0x38] sm:$0xff]
  %v155 = vld [vmem:[%s1] sm:$0xff]
  %v156 = vld [vmem:[%s1 + $0x8] sm:$0xff]
  %v157 = vld [vmem:[%s1 + $0x10] sm:$0xff]
  %v158 = vld [vmem:[%s1 + $0x18] sm:$0xff]
  %v159 = vld [vmem:[%s1 + $0x20] sm:$0xff]
  %v160 = vld [vmem:[%s1 + $0x28] sm:$0xff]
  %v161 = vld [vmem:[%s1 + $0x30] sm:$0xff]
  %v162 = vld [vmem:[%s1 + $0x38] sm:$0xff]
  %v163 = vld [vmem:[%s1 + $0x40] sm:$0xff]
  %v164 = vld [vmem:[%s1 + $0x48] sm:$0xff]
  %v165 = vld [vmem:[%s1 + $0x50] sm:$0xff]
  %v166 = vld [vmem:[%s1 + $0x58] sm:$0xff]
  %v167 = vld [vmem:[%s1 + $0x60] sm:$0xff]
  %v168 = vld [vmem:[%s1 + $0x68] sm:$0xff]
  %v169 = vld [vmem:[%s1 + $0x70] sm:$0xff]
  %v170 = vld [vmem:[%s1 + $0x78] sm:$0xff]
  %v171 = vld [vmem:[%s1 + $0x80] sm:$0xff]
  %v172 = vld [vmem:[%s1 + $0x88] sm:$0xff]
  %v173 = vld [vmem:[%s1 + $0x90] sm:$0xff]
  %v174 = vld [vmem:[%s1 + $0x98] sm:$0xff]
  %v175 = vld [vmem:[%s1 + $0xa0] sm:$0xff]
  %v176 = vld [vmem:[%s1 + $0xa8] sm:$0xff]
  %v177 = vld [vmem:[%s1 + $0xb0] sm:$0xff]
  %v178 = vld [vmem:[%s1 + $0xb8] sm:$0xff]
  %v180 = vsel %vm100, %v148, 0
  %v183 = vsel %vm100, %v150, 0
  %v186 = vsel %vm100, %v152, 0
  %v189 = vsel %vm100, %v154, 0
  %191 = vmatprep.subr.mxu0 0.0
  %192 = vmatpush1.msra.mxu0 %v155
  %193 = vmatprep.subr.mxu0 0.0
  %194 = vmatpush1.msra.mxu0 %v156
  %195 = vmatprep.subr.mxu0 0.0
  %196 = vmatpush1.msra.mxu0 %v157
  %197 = vmatprep.subr.mxu0 0.0
  %198 = vmatpush1.msra.mxu0 %v158
  %199 = vmatprep.subr.mxu0 0.0
  %200 = vmatpush1.msra.mxu0 %v159
  %201 = vmatprep.subr.mxu0 0.0
  %202 = vmatpush1.msra.mxu0 %v160
  %203 = vmatprep.subr.mxu0 0.0
  %204 = vmatpush1.msra.mxu0 %v161
  %205 = vmatprep.subr.mxu0 0.0
  %206 = vmatpush1.msra.mxu0 %v162
  %207 = vmatprep.subr.mxu0 0.0
  %208 = vmatpush1.msra.mxu0 %v163
  %209 = vmatprep.subr.mxu0 0.0
  %210 = vmatpush1.msra.mxu0 %v164
  %211 = vmatprep.subr.mxu0 0.0
  %212 = vmatpush1.msra.mxu0 %v165
  %213 = vmatprep.subr.mxu0 0.0
  %214 = vmatpush1.msra.mxu0 %v166
  %215 = vmatprep.subr.mxu0 0.0
  %216 = vmatpush1.msra.mxu0 %v167
  %217 = vmatprep.subr.mxu0 0.0
  %218 = vmatpush1.msra.mxu0 %v168
  %219 = vmatprep.subr.mxu0 0.0
  %220 = vmatpush1.msra.mxu0 %v169
  %221 = vmatprep.subr.mxu0 0.0
  %222 = vmatpush1.msra.mxu0 %v170
  %223 = vmatprep.subr.mxu0 0.0
  %224 = vmatpush1.msra.mxu0 %v171
  %225 = vmatprep.subr.mxu0 0.0
  %226 = vmatpush1.msra.mxu0 %v172
  %227 = vmatprep.subr.mxu0 0.0
  %228 = vmatpush1.msra.mxu0 %v173
  %229 = vmatprep.subr.mxu0 0.0
  %230 = vmatpush1.msra.mxu0 %v174
  %231 = vmatprep.subr.mxu0 0.0
  %232 = vmatpush1.msra.mxu0 %v175
  %233 = vmatprep.subr.mxu0 0.0
  %234 = vmatpush1.msra.mxu0 %v176
  %235 = vmatprep.subr.mxu0 0.0
  %236 = vmatpush1.msra.mxu0 %v177
  %237 = vmatprep.subr.mxu0 0.0
  %238 = vmatpush1.msra.mxu0 %v178
  %239 = vmatprep.subr.mxu0 0.0
  %240 = vmatpush1.msra.mxu0 0.0
  %241 = vmatprep.subr.mxu0 0.0
  %242 = vmatpush1.msra.mxu0 0.0
  %243 = vmatprep.subr.mxu0 0.0
  %244 = vmatpush1.msra.mxu0 0.0
  %245 = vmatprep.subr.mxu0 0.0
  %246 = vmatpush1.msra.mxu0 0.0
  %247 = vmatprep.subr.mxu0 0.0
  %248 = vmatpush1.msra.mxu0 0.0
  %249 = vmatprep.subr.mxu0 0.0
  %250 = vmatpush1.msra.mxu0 0.0
  %251 = vmatprep.subr.mxu0 0.0
  %252 = vmatpush1.msra.mxu0 0.0
  %253 = vmatprep.subr.mxu0 0.0
  %254 = vmatpush1.msra.mxu0 0.0
  %255 = vmatprep.mubr.f32.mxu0 %v180
  %256 = vmatmul.mubr.f32.gmra.mrb[0].mxu0 %v147
  %v257 = vpop.f32.mrb[0].mxu0
  %v258 = vadd.f32 0.0, %v257
  %v259 = vpop.f32.mrb[0].mxu0
  %260 = vmatprep.mubr.f32.mxu0 %v183
  %261 = vmatmul.mubr.f32.gmra.mrb[0].mxu0 %v149
  %v262 = vpop.f32.mrb[0].mxu0
  %v263 = vadd.f32 0.0, %v262
  %v264 = vpop.f32.mrb[0].mxu0
  %265 = vmatprep.mubr.f32.mxu0 %v186
  %266 = vmatmul.mubr.f32.gmra.mrb[0].mxu0 %v151
  %v267 = vpop.f32.mrb[0].mxu0
  %v268 = vadd.f32 0.0, %v267
  %v269 = vpop.f32.mrb[0].mxu0
  %270 = vmatprep.mubr.f32.mxu0 %v189
  %271 = vmatmul.mubr.f32.gmra.mrb[0].mxu0 %v153
  %v272 = vpop.f32.mrb[0].mxu0
  %v273 = vadd.f32 0.0, %v272
  %v274 = vpop.f32.mrb[0].mxu0
  %275 = vdwg.mxu0
  %v276 = vld [vmem:[%s5] sm:$0x1]
  %v277 = vadd.f32 %v258, %v263
  %v278 = vadd.f32 %v277, %v268
  %v279 = vadd.f32 %v278, %v273
  %v280 = vrot.slane %v279, 4
  %v281 = vadd.f32 %v279, %v280
  %v282 = vrot.slane %v281, 2
  %v283 = vadd.f32 %v281, %v282
  %v284 = vrot.slane %v283, 1
  %v285 = vadd.f32 %v283, %v284
  %v286 = vadd.f32 %v276, %v285
  %287 = vst [vmem:[%s5] sm:$0x1] %v286
  %v288 = vld [vmem:[%s6] sm:$0x1]
  %v289 = vmul.f32 %v258, %v258
  %v290 = vmul.f32 %v263, %v263
  %v291 = vmul.f32 %v268, %v268
  %v292 = vmul.f32 %v273, %v273
  %v293 = vadd.f32 %v289, %v290
  %v294 = vadd.f32 %v293, %v291
  %v295 = vadd.f32 %v294, %v292
  %v296 = vrot.slane %v295, 4
  %v297 = vadd.f32 %v295, %v296
  %v298 = vrot.slane %v297, 2
  %v299 = vadd.f32 %v297, %v298
  %v300 = vrot.slane %v299, 1
  %v301 = vadd.f32 %v299, %v300
  %v302 = vadd.f32 %v288, %v301
  %303 = vst [vmem:[%s6] sm:$0x1] %v302
  %304 = vst [vmem:[%s4] sm:$0xff] %v258
  %305 = vst [vmem:[%s4 + $0x8] sm:$0xff] %v263
  %306 = vst [vmem:[%s4 + $0x10] sm:$0xff] %v268
  %307 = vst [vmem:[%s4 + $0x18] sm:$0xff] %v273
  // Predicated region
  $region22: #{residual_conv_forward.4} parent=0 // pred_check
    _
  $region23: #{residual_conv_forward.4} parent=0 // pred_check_branch
    %309 = sbr.rel (0) target = $region25
  $region24: #{residual_conv_forward.4} parent=0 // pred_region
    _
  $region25: #{residual_conv_forward.4} parent=0 // pred_fallthru
    _
  // Predicated region
  $region26: #{residual_conv_forward.4} parent=0 // pred_check
    _
  $region27: #{residual_conv_forward.4} parent=0 // pred_check_branch
    %311 = sbr.rel (0) target = $region29
  $region28: #{residual_conv_forward.4} parent=0 // pred_region
    _
  $region29: #{residual_conv_forward.4} parent=0 // pred_fallthru
    _
  // Predicated region
  $region30: #{residual_conv_forward.4} parent=0 // pred_check
    _
  $region31: #{residual_conv_forward.4} parent=0 // pred_check_branch
    %313 = sbr.rel (0) target = $region33
  $region32: #{residual_conv_forward.4} parent=0 // pred_region
    _
  $region33: #{residual_conv_forward.4} parent=0 // pred_fallthru
    _
  // Predicated region
  $region34: #{residual_conv_forward.4} parent=0 // pred_check
    _
  $region35: #{residual_conv_forward.4} parent=0 // pred_check_branch
    %315 = sbr.rel (0) target = $region37
  $region36: #{residual_conv_forward.4} parent=0 // pred_region
    _
  $region37: #{residual_conv_forward.4} parent=0 // pred_fallthru
    _
  // Predicated region
  $region38: #{residual_conv_forward.4} parent=0 // pred_check
    _
  $region39: #{residual_conv_forward.4} parent=0 // pred_check_branch
    %317 = sbr.rel (0) target = $region41
  $region40: #{residual_conv_forward.4} parent=0 // pred_region
    _
  $region41: #{residual_conv_forward.4} parent=0 // pred_fallthru
    _
  // Predicated region
  $region42: #{residual_conv_forward.4} parent=0 // pred_check
    _
  $region43: #{residual_conv_forward.4} parent=0 // pred_check_branch
    %319 = sbr.rel (0) target = $region45
  $region44: #{residual_conv_forward.4} parent=0 // pred_region
    _
  $region45: #{residual_conv_forward.4} parent=0 // pred_fallthru
    _

// kernel: tile.49
$region0: #{tile.49}
  %s0 = inlined_call_operand.vmem [shape: f32[16,8], index: 0, kind: input, shape index: {}]
  %s1 = inlined_call_operand.vmem [shape: f32[1,128], index: 1, kind: output, shape index: {}]
  $region1: #{tile.49} parent=0
    #allocation0 [shape = 'u8[4096]{0}', space=vmem, size = 0x1000, scoped, tag = 'scoped mem for output reshape']
    %v2 = vld [vmem:[%s0] sm:$0x1]
    %vm3 = vcmask 64512
    %4 = vst.msk [vmem:[#allocation0] sm:$0x1] %vm3, %v2
    %s5 = scalar_lea.vmem %s0, 15
    %v6 = vld [vmem:[%s5] sm:$0x1]
    %7 = vrot.lane.b32.xlu0 %v6, 120
    %v8 = vpop.permute.xlu0 %7
    %vm9 = vcmask 1048512
    %10 = vst.msk [vmem:[#allocation0] sm:$0x1] %vm9, %v8
    %s11 = scalar_lea.vmem %s0, 14
    %v12 = vld [vmem:[%s11] sm:$0x1]
    %13 = vrot.lane.b32.xlu0 %v12, 112
    %v14 = vpop.permute.xlu0 %13
    %vm15 = vcmask 982912
    %16 = vst.msk [vmem:[#allocation0] sm:$0x1] %vm15, %v14
    %s17 = scalar_lea.vmem %s0, 13
    %v18 = vld [vmem:[%s17] sm:$0x1]
    %19 = vrot.lane.b32.xlu0 %v18, 104
    %v20 = vpop.permute.xlu0 %19
    %vm21 = vcmask 917312
    %22 = vst.msk [vmem:[#allocation0] sm:$0x1] %vm21, %v20
    %s23 = scalar_lea.vmem %s0, 12
    %v24 = vld [vmem:[%s23] sm:$0x1]
    %25 = vrot.lane.b32.xlu0 %v24, 96
    %v26 = vpop.permute.xlu0 %25
    %vm27 = vcmask 851712
    %28 = vst.msk [vmem:[#allocation0] sm:$0x1] %vm27, %v26
    %s29 = scalar_lea.vmem %s0, 11
    %v30 = vld [vmem:[%s29] sm:$0x1]
    %31 = vrot.lane.b32.xlu0 %v30, 88
    %v32 = vpop.permute.xlu0 %31
    %vm33 = vcmask 786112
    %34 = vst.msk [vmem:[#allocation0] sm:$0x1] %vm33, %v32
    %s35 = scalar_lea.vmem %s0, 10
    %v36 = vld [vmem:[%s35] sm:$0x1]
    %37 = vrot.lane.b32.xlu0 %v36, 80
    %v38 = vpop.permute.xlu0 %37
    %vm39 = vcmask 720512
    %40 = vst.msk [vmem:[#allocation0] sm:$0x1] %vm39, %v38
    %s41 = scalar_lea.vmem %s0, 9
    %v42 = vld [vmem:[%s41] sm:$0x1]
    %43 = vrot.lane.b32.xlu0 %v42, 72
    %v44 = vpop.permute.xlu0 %43
    %vm45 = vcmask 654912
    %46 = vst.msk [vmem:[#allocation0] sm:$0x1] %vm45, %v44
    %s47 = scalar_lea.vmem %s0, 8
    %v48 = vld [vmem:[%s47] sm:$0x1]
    %49 = vrot.lane.b32.xlu0 %v48, 64
    %v50 = vpop.permute.xlu0 %49
    %vm51 = vcmask 589312
    %52 = vst.msk [vmem:[#allocation0] sm:$0x1] %vm51, %v50
    %s53 = scalar_lea.vmem %s0, 7
    %v54 = vld [vmem:[%s53] sm:$0x1]
    %55 = vrot.lane.b32.xlu0 %v54, 56
    %v56 = vpop.permute.xlu0 %55
    %vm57 = vcmask 523712
    %58 = vst.msk [vmem:[#allocation0] sm:$0x1] %vm57, %v56
    %s59 = scalar_lea.vmem %s0, 6
    %v60 = vld [vmem:[%s59] sm:$0x1]
    %61 = vrot.lane.b32.xlu0 %v60, 48
    %v62 = vpop.permute.xlu0 %61
    %vm63 = vcmask 458112
    %64 = vst.msk [vmem:[#allocation0] sm:$0x1] %vm63, %v62
    %s65 = scalar_lea.vmem %s0, 5
    %v66 = vld [vmem:[%s65] sm:$0x1]
    %67 = vrot.lane.b32.xlu0 %v66, 40
    %v68 = vpop.permute.xlu0 %67
    %vm69 = vcmask 392512
    %70 = vst.msk [vmem:[#allocation0] sm:$0x1] %vm69, %v68
    %s71 = scalar_lea.vmem %s0, 4
    %v72 = vld [vmem:[%s71] sm:$0x1]
    %73 = vrot.lane.b32.xlu0 %v72, 32
    %v74 = vpop.permute.xlu0 %73
    %vm75 = vcmask 326912
    %76 = vst.msk [vmem:[#allocation0] sm:$0x1] %vm75, %v74
    %s77 = scalar_lea.vmem %s0, 3
    %v78 = vld [vmem:[%s77] sm:$0x1]
    %79 = vrot.lane.b32.xlu0 %v78, 24
    %v80 = vpop.permute.xlu0 %79
    %vm81 = vcmask 261312
    %82 = vst.msk [vmem:[#allocation0] sm:$0x1] %vm81, %v80
    %s83 = scalar_lea.vmem %s0, 2
    %v84 = vld [vmem:[%s83] sm:$0x1]
    %85 = vrot.lane.b32.xlu0 %v84, 16
    %v86 = vpop.permute.xlu0 %85
    %vm87 = vcmask 195712
    %88 = vst.msk [vmem:[#allocation0] sm:$0x1] %vm87, %v86
    %s89 = scalar_lea.vmem %s0, 1
    %v90 = vld [vmem:[%s89] sm:$0x1]
    %91 = vrot.lane.b32.xlu0 %v90, 8
    %v92 = vpop.permute.xlu0 %91
    %vm93 = vcmask 130112
    %94 = vst.msk [vmem:[#allocation0] sm:$0x1] %vm93, %v92
    %s96 = sshllo.u32 0, 1
    %v98 = vld [vmem:[#allocation0] sm:%s96]
    %s99 = sshllo.u32 0, 1
    %100 = vst [vmem:[%s1] sm:%s99] %v98

// kernel: residual_conv_forward.5
$region0: #{residual_conv_forward.5}
  #allocation0 [shape = 'u32[]', space=smem, size = 0x4, offset = 0x4, fixed_abs, tag = 'smem constant byte address 0x4 - core index']
  #allocation1 [shape = 'u32[144,128]{1,0:T(1,128)}', space=vmem, size = 0x12000, scoped, tag = 'internal scratch']
  #allocation2 [shape = 'f32[16,384]{1,0:T(8,128)}', space=vmem, size = 0x6000, scoped, tag = 'scratch operand']
  %s0 = inlined_call_operand.vmem [shape: f32[32,128], index: 0, kind: input, shape index: {}]
  %s1 = inlined_call_operand.vmem [shape: f32[384,128], index: 1, kind: input, shape index: {}]
  %s2 = inlined_call_operand.vmem [shape: f32[1,128], index: 2, kind: input, shape index: {}]
  %s3 = inlined_call_operand.vmem [shape: f32[1,128], index: 3, kind: input, shape index: {}]
  %s4 = inlined_call_operand.vmem [shape: f32[1,128], index: 4, kind: input, shape index: {}]
  %s5 = inlined_call_operand.vmem [shape: f32[32,128], index: 5, kind: input, shape index: {}]
  %s6 = inlined_call_operand.vmem [shape: f32[1,128], index: 6, kind: input, shape index: {}]
  %s7 = inlined_call_operand.vmem [shape: f32[1,128], index: 7, kind: input, shape index: {}]
  %s8 = inlined_call_operand.vmem [shape: f32[32,128], index: 8, kind: output, shape index: {}]
  %s9 = sld [smem:[#allocation0]]
  $region65: #{residual_conv_forward.5} parent=0
    _
  %s11 = ssub.s32 1, %s9
  %s12 = scalar_select 0, %s11, %s9
  loop: start=0, step=1, limit=4
  $region2: #{residual_conv_forward.5} parent=0 // loop_pre_header
    _
  $region3: #{residual_conv_forward.5} parent=0 // loop_header
    %s14 = sphi 0, %s18
    %p15 = scmp.ge.s32.totalorder %s14, 4
    %s24 = sphi 0, %s26
    %s27 = sphi 0, %s24
    %s28 = sphi 0, %s27
    %s44 = sphi 0, %s28
    %s48 = sphi 0, %s48
    %s50 = sphi 0, %s48
    %s51 = sphi 0, %s50
    %s65 = sphi 0, %s51
    %s69 = sphi 0, %s69
    %s71 = sphi 0, %s69
    %s72 = sphi 0, %s71
    %s86 = sphi 0, %s72
    %s90 = sphi 0, %s90
    %s92 = sphi 0, %s90
    %s93 = sphi 0, %s92
    %s107 = sphi 0, %s93
    %s111 = sphi 0, %s111
    %s113 = sphi 0, %s111
    %s114 = sphi 0, %s113
    %s128 = sphi 0, %s114
    %s134 = sphi 0, %s136
    %s137 = sphi 0, %s134
    %s138 = sphi 0, %s137
    %s154 = sphi 0, %s138
    %s158 = sphi 0, %s158
    %s160 = sphi 0, %s158
    %s161 = sphi 0, %s160
    %s175 = sphi 0, %s161
    %s179 = sphi 0, %s179
    %s181 = sphi 0, %s179
    %s182 = sphi 0, %s181
    %s196 = sphi 0, %s182
    %s202 = sphi 0, %s204
    %s205 = sphi 0, %s202
    %s206 = sphi 0, %s205
    %s222 = sphi 0, %s206
  $region4: #{residual_conv_forward.5} parent=0 // loop_header_branch
    %17 = sbr.rel (%p15) target = $region8
  $region5: #{residual_conv_forward.5} parent=0 // loop_body
    %s19 = ssub.s32 %s14, 1
    %s20 = ssub.s32 %s14, 2
    %s21 = sadd.s32 %s14, 1
    %s22 = ssub.s32 %s14, %s21
    %p23 = scmp.eq.s32.totalorder %s22, 0
    %s25 = sadd.s32 %s24, 1
    %s26 = scalar_select %p23, %s24, %s25
    %p29 = pneg %p23
    %p30 = scmp.eq.s32.totalorder %s14, 1
    %p31 = por %p29, %p30
    %p32 = scmp.ne.s32.totalorder %s24, %s27
    %p33 = scmp.eq.s32.totalorder %s14, 0
    %p34 = por %p32, %p33
    %p35 = scmp.ne.s32.totalorder %s24, %s27
    %p36 = scmp.eq.s32.totalorder %s19, 1
    %p37 = por %p35, %p36
    %p38 = scmp.ne.s32.totalorder %s27, %s28
    %p39 = scmp.eq.s32.totalorder %s19, 0
    %p40 = por %p38, %p39
    %p41 = scmp.ne.s32.totalorder %s27, %s28
    %p42 = scmp.eq.s32.totalorder %s20, 1
    %p43 = por %p41, %p42
    %p45 = scmp.ne.s32.totalorder %s28, %s44
    %p46 = scmp.eq.s32.totalorder %s20, 0
    %p47 = por %p45, %p46
    %s49 = sadd.s32 %s48, 1
    %p52 = scmp.eq.s32.totalorder %s14, 1
    %p53 = scmp.ne.s32.totalorder %s48, %s50
    %p54 = scmp.eq.s32.totalorder %s14, 0
    %p55 = por %p53, %p54
    %p56 = scmp.ne.s32.totalorder %s48, %s50
    %p57 = scmp.eq.s32.totalorder %s19, 1
    %p58 = por %p56, %p57
    %p59 = scmp.ne.s32.totalorder %s50, %s51
    %p60 = scmp.eq.s32.totalorder %s19, 0
    %p61 = por %p59, %p60
    %p62 = scmp.ne.s32.totalorder %s50, %s51
    %p63 = scmp.eq.s32.totalorder %s20, 1
    %p64 = por %p62, %p63
    %p66 = scmp.ne.s32.totalorder %s51, %s65
    %p67 = scmp.eq.s32.totalorder %s20, 0
    %p68 = por %p66, %p67
    %s70 = sadd.s32 %s69, 1
    %p73 = scmp.eq.s32.totalorder %s14, 1
    %p74 = scmp.ne.s32.totalorder %s69, %s71
    %p75 = scmp.eq.s32.totalorder %s14, 0
    %p76 = por %p74, %p75
    %p77 = scmp.ne.s32.totalorder %s69, %s71
    %p78 = scmp.eq.s32.totalorder %s19, 1
    %p79 = por %p77, %p78
    %p80 = scmp.ne.s32.totalorder %s71, %s72
    %p81 = scmp.eq.s32.totalorder %s19, 0
    %p82 = por %p80, %p81
    %p83 = scmp.ne.s32.totalorder %s71, %s72
    %p84 = scmp.eq.s32.totalorder %s20, 1
    %p85 = por %p83, %p84
    %p87 = scmp.ne.s32.totalorder %s72, %s86
    %p88 = scmp.eq.s32.totalorder %s20, 0
    %p89 = por %p87, %p88
    %s91 = sadd.s32 %s90, 1
    %p94 = scmp.eq.s32.totalorder %s14, 1
    %p95 = scmp.ne.s32.totalorder %s90, %s92
    %p96 = scmp.eq.s32.totalorder %s14, 0
    %p97 = por %p95, %p96
    %p98 = scmp.ne.s32.totalorder %s90, %s92
    %p99 = scmp.eq.s32.totalorder %s19, 1
    %p100 = por %p98, %p99
    %p101 = scmp.ne.s32.totalorder %s92, %s93
    %p102 = scmp.eq.s32.totalorder %s19, 0
    %p103 = por %p101, %p102
    %p104 = scmp.ne.s32.totalorder %s92, %s93
    %p105 = scmp.eq.s32.totalorder %s20, 1
    %p106 = por %p104, %p105
    %p108 = scmp.ne.s32.totalorder %s93, %s107
    %p109 = scmp.eq.s32.totalorder %s20, 0
    %p110 = por %p108, %p109
    %s112 = sadd.s32 %s111, 1
    %p115 = scmp.eq.s32.totalorder %s14, 1
    %p116 = scmp.ne.s32.totalorder %s111, %s113
    %p117 = scmp.eq.s32.totalorder %s14, 0
    %p118 = por %p116, %p117
    %p119 = scmp.ne.s32.totalorder %s111, %s113
    %p120 = scmp.eq.s32.totalorder %s19, 1
    %p121 = por %p119, %p120
    %p122 = scmp.ne.s32.totalorder %s113, %s114
    %p123 = scmp.eq.s32.totalorder %s19, 0
    %p124 = por %p122, %p123
    %p125 = scmp.ne.s32.totalorder %s113, %s114
    %p126 = scmp.eq.s32.totalorder %s20, 1
    %p127 = por %p125, %p126
    %p129 = scmp.ne.s32.totalorder %s114, %s128
    %p130 = scmp.eq.s32.totalorder %s20, 0
    %p131 = por %p129, %p130
    %s132 = ssub.s32 %s14, %s21
    %p133 = scmp.eq.s32.totalorder %s132, 0
    %s135 = sadd.s32 %s134, 1
    %s136 = scalar_select %p133, %s134, %s135
    %p139 = pneg %p133
    %p140 = scmp.eq.s32.totalorder %s14, 1
    %p141 = por %p139, %p140
    %p142 = scmp.ne.s32.totalorder %s134, %s137
    %p143 = scmp.eq.s32.totalorder %s14, 0
    %p144 = por %p142, %p143
    %p145 = scmp.ne.s32.totalorder %s134, %s137
    %p146 = scmp.eq.s32.totalorder %s19, 1
    %p147 = por %p145, %p146
    %p148 = scmp.ne.s32.totalorder %s137, %s138
    %p149 = scmp.eq.s32.totalorder %s19, 0
    %p150 = por %p148, %p149
    %p151 = scmp.ne.s32.totalorder %s137, %s138
    %p152 = scmp.eq.s32.totalorder %s20, 1
    %p153 = por %p151, %p152
    %p155 = scmp.ne.s32.totalorder %s138, %s154
    %p156 = scmp.eq.s32.totalorder %s20, 0
    %p157 = por %p155, %p156
    %s159 = sadd.s32 %s158, 1
    %p162 = scmp.eq.s32.totalorder %s14, 1
    %p163 = scmp.ne.s32.totalorder %s158, %s160
    %p164 = scmp.eq.s32.totalorder %s14, 0
    %p165 = por %p163, %p164
    %p166 = scmp.ne.s32.totalorder %s158, %s160
    %p167 = scmp.eq.s32.totalorder %s19, 1
    %p168 = por %p166, %p167
    %p169 = scmp.ne.s32.totalorder %s160, %s161
    %p170 = scmp.eq.s32.totalorder %s19, 0
    %p171 = por %p169, %p170
    %p172 = scmp.ne.s32.totalorder %s160, %s161
    %p173 = scmp.eq.s32.totalorder %s20, 1
    %p174 = por %p172, %p173
    %p176 = scmp.ne.s32.totalorder %s161, %s175
    %p177 = scmp.eq.s32.totalorder %s20, 0
    %p178 = por %p176, %p177
    %s180 = sadd.s32 %s179, 1
    %p183 = scmp.eq.s32.totalorder %s14, 1
    %p184 = scmp.ne.s32.totalorder %s179, %s181
    %p185 = scmp.eq.s32.totalorder %s14, 0
    %p186 = por %p184, %p185
    %p187 = scmp.ne.s32.totalorder %s179, %s181
    %p188 = scmp.eq.s32.totalorder %s19, 1
    %p189 = por %p187, %p188
    %p190 = scmp.ne.s32.totalorder %s181, %s182
    %p191 = scmp.eq.s32.totalorder %s19, 0
    %p192 = por %p190, %p191
    %p193 = scmp.ne.s32.totalorder %s181, %s182
    %p194 = scmp.eq.s32.totalorder %s20, 1
    %p195 = por %p193, %p194
    %p197 = scmp.ne.s32.totalorder %s182, %s196
    %p198 = scmp.eq.s32.totalorder %s20, 0
    %p199 = por %p197, %p198
    %s200 = ssub.s32 %s14, %s21
    %p201 = scmp.eq.s32.totalorder %s200, 0
    %s203 = sadd.s32 %s202, 1
    %s204 = scalar_select %p201, %s202, %s203
    %p207 = pneg %p201
    %p208 = scmp.eq.s32.totalorder %s14, 1
    %p209 = por %p207, %p208
    %p210 = scmp.ne.s32.totalorder %s202, %s205
    %p211 = scmp.eq.s32.totalorder %s14, 0
    %p212 = por %p210, %p211
    %p213 = scmp.ne.s32.totalorder %s202, %s205
    %p214 = scmp.eq.s32.totalorder %s19, 1
    %p215 = por %p213, %p214
    %p216 = scmp.ne.s32.totalorder %s205, %s206
    %p217 = scmp.eq.s32.totalorder %s19, 0
    %p218 = por %p216, %p217
    %p219 = scmp.ne.s32.totalorder %s205, %s206
    %p220 = scmp.eq.s32.totalorder %s20, 1
    %p221 = por %p219, %p220
    %p223 = scmp.ne.s32.totalorder %s206, %s222
    %p224 = scmp.eq.s32.totalorder %s20, 0
    %p225 = por %p223, %p224
    %p226 = scmp.le.s32.totalorder 1, %s14
    %p227 = scmp.lt.s32.totalorder %s14, 3
    %p228 = pnand %p226, %p227
    %p229 = pneg %p228
    // Predicated region
    $region9: #{residual_conv_forward.5} parent=5 // pred_check
      _
    $region10: #{residual_conv_forward.5} parent=5 // pred_check_branch
      %231 = sbr.rel (%p228) target = $region12
    $region11: #{residual_conv_forward.5} parent=5 // pred_region
      %s232 = ssub.s32 %s14, 1
      // Predicated region
      $region13: #{residual_conv_forward.5} parent=11 // pred_check
        %p233 = pneg %p61
      $region14: #{residual_conv_forward.5} parent=11 // pred_check_branch
        %235 = sbr.rel (%p233) target = $region16
      $region15: #{residual_conv_forward.5} parent=11 // pred_region
        _
      $region16: #{residual_conv_forward.5} parent=11 // pred_fallthru
        _
      // Predicated region
      $region17: #{residual_conv_forward.5} parent=11 // pred_check
        %p236 = pneg %p82
      $region18: #{residual_conv_forward.5} parent=11 // pred_check_branch
        %238 = sbr.rel (%p236) target = $region20
      $region19: #{residual_conv_forward.5} parent=11 // pred_region
        _
      $region20: #{residual_conv_forward.5} parent=11 // pred_fallthru
        _
      // Predicated region
      $region21: #{residual_conv_forward.5} parent=11 // pred_check
        %p239 = pneg %p103
      $region22: #{residual_conv_forward.5} parent=11 // pred_check_branch
        %241 = sbr.rel (%p239) target = $region24
      $region23: #{residual_conv_forward.5} parent=11 // pred_region
        _
      $region24: #{residual_conv_forward.5} parent=11 // pred_fallthru
        _
      // Predicated region
      $region25: #{residual_conv_forward.5} parent=11 // pred_check
        %p242 = pneg %p124
      $region26: #{residual_conv_forward.5} parent=11 // pred_check_branch
        %244 = sbr.rel (%p242) target = $region28
      $region27: #{residual_conv_forward.5} parent=11 // pred_region
        _
      $region28: #{residual_conv_forward.5} parent=11 // pred_fallthru
        _
      // Predicated region
      $region29: #{residual_conv_forward.5} parent=11 // pred_check
        %p245 = pneg %p171
      $region30: #{residual_conv_forward.5} parent=11 // pred_check_branch
        %247 = sbr.rel (%p245) target = $region32
      $region31: #{residual_conv_forward.5} parent=11 // pred_region
        _
      $region32: #{residual_conv_forward.5} parent=11 // pred_fallthru
        _
      // Predicated region
      $region33: #{residual_conv_forward.5} parent=11 // pred_check
        %p248 = pneg %p192
      $region34: #{residual_conv_forward.5} parent=11 // pred_check_branch
        %250 = sbr.rel (%p248) target = $region36
      $region35: #{residual_conv_forward.5} parent=11 // pred_region
        _
      $region36: #{residual_conv_forward.5} parent=11 // pred_fallthru
        _
    $region12: #{residual_conv_forward.5} parent=5 // pred_fallthru
      _
    %p251 = scmp.lt.s32.totalorder %s14, 2
    // Predicated region
    $region37: #{residual_conv_forward.5} parent=5 // pred_check
      %p252 = pneg %p251
    $region38: #{residual_conv_forward.5} parent=5 // pred_check_branch
      %254 = sbr.rel (%p252) target = $region40
    $region39: #{residual_conv_forward.5} parent=5 // pred_region
      // Predicated region
      $region41: #{residual_conv_forward.5} parent=39 // pred_check
        %p255 = pneg %p34
      $region42: #{residual_conv_forward.5} parent=39 // pred_check_branch
        %257 = sbr.rel (%p255) target = $region44
      $region43: #{residual_conv_forward.5} parent=39 // pred_region
        %s258 = smul.u32 2, %s14
        %p259 = scmp.lt.s32.totalorder %s258, 3
        %s260 = scalar_select %p259, %s258, 3
        %s261 = smul.addr %s260, 8
        %s262 = scalar_lea.vmem %s0, %s261
        %s263 = smul.u32 2, %s14
      $region44: #{residual_conv_forward.5} parent=39 // pred_fallthru
        _
      // Predicated region
      $region45: #{residual_conv_forward.5} parent=39 // pred_check
        %p264 = pneg %p144
      $region46: #{residual_conv_forward.5} parent=39 // pred_check_branch
        %266 = sbr.rel (%p264) target = $region48
      $region47: #{residual_conv_forward.5} parent=39 // pred_region
        %s267 = smul.u32 2, %s14
        %p268 = scmp.lt.s32.totalorder %s267, 3
        %s269 = scalar_select %p268, %s267, 3
        %s270 = smul.addr %s269, 8
        %s271 = scalar_lea.vmem %s5, %s270
        %s272 = smul.u32 2, %s14
      $region48: #{residual_conv_forward.5} parent=39 // pred_fallthru
        _
    $region40: #{residual_conv_forward.5} parent=5 // pred_fallthru
      _
    %p273 = scmp.le.s32.totalorder 1, %s14
    %p274 = scmp.lt.s32.totalorder %s14, 3
    %p275 = pnand %p273, %p274
    %p276 = pneg %p275
    // Predicated region
    $region49: #{residual_conv_forward.5} parent=5 // pred_check
      _
    $region50: #{residual_conv_forward.5} parent=5 // pred_check_branch
      %278 = sbr.rel (%p275) target = $region52
    $region51: #{residual_conv_forward.5} parent=5 // pred_region
      %s279 = ssub.s32 %s14, 1
      %s280 = smul.u32 2, %s19
      %p281 = scmp.lt.s32.totalorder %s280, 3
      %s282 = scalar_select %p281, %s280, 3
      %s283 = smul.addr %s282, 8
      %s284 = scalar_lea.vmem %s0, %s283
      %p285 = pneg %p40
      %p286 = pneg %p37
      %p287 = pneg %p61
      %p288 = pneg %p58
      %p289 = pneg %p82
      %p290 = pneg %p79
      %p291 = pneg %p103
      %p292 = pneg %p100
      %p293 = pneg %p124
      %p294 = pneg %p121
      %s295 = smul.u32 2, %s19
      %p296 = scmp.lt.s32.totalorder %s295, 3
      %s297 = scalar_select %p296, %s295, 3
      %s298 = smul.addr %s297, 8
      %s299 = scalar_lea.vmem %s5, %s298
      %p300 = pneg %p150
      %p301 = pneg %p147
      %p302 = pneg %p171
      %p303 = pneg %p168
      %p304 = pneg %p192
      %p305 = pneg %p189
      %p306 = pneg %p218
      %p307 = pneg %p215
      %s308 = smul.u32 2, %s19
      %p309 = scmp.lt.s32.totalorder %s308, 3
      %s310 = scalar_select %p309, %s308, 3
      %s311 = smul.addr %s310, 8
      %s312 = scalar_lea.vmem %s8, %s311
      %s313 = smul.u32 2, %s19
      %p314 = scmp.lt.s32.totalorder %s313, 3
      %s315 = scalar_select %p314, %s313, 3
      %s316 = smul.addr %s315, 8
      %s317 = scalar_lea.vmem %s0, %s316
      %s318 = smul.u32 2, %s19
      %s319 = smul.u32 2, %s19
      %p320 = scmp.lt.s32.totalorder %s319, 3
      %s321 = scalar_select %p320, %s319, 3
      %s322 = smul.addr %s321, 8
      %s323 = scalar_lea.vmem %s5, %s322
      %s324 = smul.u32 2, %s19
      %s325 = smul.u32 2, %s19
      %p326 = scmp.lt.s32.totalorder %s325, 3
      %s327 = scalar_select %p326, %s325, 3
      %s328 = smul.addr %s327, 8
      %s329 = scalar_lea.vmem %s8, %s328
      %s330 = smul.u32 2, %s19
      %v331 = vld [vmem:[%s317] sm:$0xff]
      %v332 = vld [vmem:[%s317 + $0x8] sm:$0xff]
      %v333 = vld [vmem:[%s2] sm:$0x1]
      %v335 = vlaneseq
      %v336 = vshrl.u32 %v335, 7
      %v337 = vsub.s32 0, %v336
      %v338 = vrot.slane %v333, %v337
      %v340 = vmul.f32 %v331, %v338
      %v341 = vmul.f32 %v332, %v338
      %v342 = vld [vmem:[%s3] sm:$0x1]
      %v344 = vlaneseq
      %v345 = vshrl.u32 %v344, 7
      %v346 = vsub.s32 0, %v345
      %v347 = vrot.slane %v342, %v346
      %v349 = vadd.f32 %v340, %v347
      %v350 = vadd.f32 %v341, %v347
      %v351 = vmin.f32 %v349, 20.0
      %v352 = vmin.f32 %v350, 20.0
      %v353 = vmul.f32 %v351, 1.442695
      %v354 = vpow.pop %v353
      %v355 = vmul.f32 %v352, 1.442695
      %v356 = vpow.pop %v355
      %v357 = vadd.f32 %v354, 2.0
      %v358 = vadd.f32 %v356, 2.0
      %v359 = vmul.f32 %v354, %v357
      %v360 = vmul.f32 %v356, %v358
      %v361 = vadd.f32 %v359, 2.0
      %v362 = vadd.f32 %v360, 2.0
      %v363 = vrcp.pop %v361
      %v364 = vmul.f32 %v359, %v363
      %v365 = vrcp.pop %v362
      %v366 = vmul.f32 %v360, %v365
      %v367 = vmul.f32 %v349, %v364
      %v368 = vmul.f32 %v350, %v366
      %369 = vst [vmem:[#allocation2] sm:$0x1] 0.0
      %vm372 = vcmask 1040384
      %v373 = vrot.slane %v367, 7
      %v374 = vrot.slane %v368, 7
      %v375 = vsel %vm372, %v373, %v374
      %378 = vst [vmem:[#allocation2] sm:$0xfe] %v373
      %379 = vst [vmem:[#allocation2 + $0x18] sm:$0xff] %v375
      %380 = vst [vmem:[#allocation2 + $0x8] sm:$0xff] %v367
      %381 = vst [vmem:[#allocation2 + $0x20] sm:$0xff] %v368
      %382 = vst [vmem:[#allocation2 + $0x2f] sm:$0x1] 0.0
      %vm383 = vcmask 1046528
      %v384 = vrot.slane %v367, 1
      %v385 = vrot.slane %v368, 1
      %v386 = vsel %vm383, %v384, %v385
      %389 = vst [vmem:[#allocation2 + $0x10] sm:$0xff] %v386
      %390 = vst [vmem:[#allocation2 + $0x28] sm:$0x7f] %v385
      %v391 = vld [vmem:[#allocation2] sm:$0xff]
      %v392 = vld [vmem:[#allocation2 + $0x8] sm:$0xff]
      %v393 = vld [vmem:[#allocation2 + $0x10] sm:$0xff]
      %v394 = vld [vmem:[#allocation2 + $0x18] sm:$0xff]
      %v395 = vld [vmem:[#allocation2 + $0x20] sm:$0xff]
      %v396 = vld [vmem:[#allocation2 + $0x28] sm:$0xff]
      %v397 = vld [vmem:[%s1] sm:$0xff]
      %v398 = vld [vmem:[%s1 + $0x8] sm:$0xff]
      %v399 = vld [vmem:[%s1 + $0x10] sm:$0xff]
      %v400 = vld [vmem:[%s1 + $0x18] sm:$0xff]
      %v401 = vld [vmem:[%s1 + $0x20] sm:$0xff]
      %v402 = vld [vmem:[%s1 + $0x28] sm:$0xff]
      %v403 = vld [vmem:[%s1 + $0x30] sm:$0xff]
      %v404 = vld [vmem:[%s1 + $0x38] sm:$0xff]
      %v405 = vld [vmem:[%s1 + $0x40] sm:$0xff]
      %v406 = vld [vmem:[%s1 + $0x48] sm:$0xff]
      %v407 = vld [vmem:[%s1 + $0x50] sm:$0xff]
      %v408 = vld [vmem:[%s1 + $0x58] sm:$0xff]
      %v409 = vld [vmem:[%s1 + $0x60] sm:$0xff]
      %v410 = vld [vmem:[%s1 + $0x68] sm:$0xff]
      %v411 = vld [vmem:[%s1 + $0x70] sm:$0xff]
      %v412 = vld [vmem:[%s1 + $0x78] sm:$0xff]
      %v413 = vld [vmem:[%s1 + $0x80] sm:$0xff]
      %v414 = vld [vmem:[%s1 + $0x88] sm:$0xff]
      %v415 = vld [vmem:[%s1 + $0x90] sm:$0xff]
      %v416 = vld [vmem:[%s1 + $0x98] sm:$0xff]
      %v417 = vld [vmem:[%s1 + $0xa0] sm:$0xff]
      %v418 = vld [vmem:[%s1 + $0xa8] sm:$0xff]
      %v419 = vld [vmem:[%s1 + $0xb0] sm:$0xff]
      %v420 = vld [vmem:[%s1 + $0xb8] sm:$0xff]
      %v421 = vld [vmem:[%s1 + $0xc0] sm:$0xff]
      %v422 = vld [vmem:[%s1 + $0xc8] sm:$0xff]
      %v423 = vld [vmem:[%s1 + $0xd0] sm:$0xff]
      %v424 = vld [vmem:[%s1 + $0xd8] sm:$0xff]
      %v425 = vld [vmem:[%s1 + $0xe0] sm:$0xff]
      %v426 = vld [vmem:[%s1 + $0xe8] sm:$0xff]
      %v427 = vld [vmem:[%s1 + $0xf0] sm:$0xff]
      %v428 = vld [vmem:[%s1 + $0xf8] sm:$0xff]
      %v429 = vld [vmem:[%s1 + $0x100] sm:$0xff]
      %v430 = vld [vmem:[%s1 + $0x108] sm:$0xff]
      %v431 = vld [vmem:[%s1 + $0x110] sm:$0xff]
      %v432 = vld [vmem:[%s1 + $0x118] sm:$0xff]
      %v433 = vld [vmem:[%s1 + $0x120] sm:$0xff]
      %v434 = vld [vmem:[%s1 + $0x128] sm:$0xff]
      %v435 = vld [vmem:[%s1 + $0x130] sm:$0xff]
      %v436 = vld [vmem:[%s1 + $0x138] sm:$0xff]
      %v437 = vld [vmem:[%s1 + $0x140] sm:$0xff]
      %v438 = vld [vmem:[%s1 + $0x148] sm:$0xff]
      %v439 = vld [vmem:[%s1 + $0x150] sm:$0xff]
      %v440 = vld [vmem:[%s1 + $0x158] sm:$0xff]
      %v441 = vld [vmem:[%s1 + $0x160] sm:$0xff]
      %v442 = vld [vmem:[%s1 + $0x168] sm:$0xff]
      %v443 = vld [vmem:[%s1 + $0x170] sm:$0xff]
      %v444 = vld [vmem:[%s1 + $0x178] sm:$0xff]
      %v445 = vld [vmem:[%s4] sm:$0x1]
      %v447 = vlaneseq
      %v448 = vshrl.u32 %v447, 7
      %v449 = vsub.s32 0, %v448
      %v450 = vrot.slane %v445, %v449
      %452 = vmatprep.subr.mxu0 0.0
      %453 = vmatpush1.msra.mxu0 %v397
      %454 = vmatprep.subr.mxu0 0.0
      %455 = vmatpush1.msra.mxu0 %v398
      %456 = vmatprep.subr.mxu0 0.0
      %457 = vmatpush1.msra.mxu0 %v399
      %458 = vmatprep.subr.mxu0 0.0
      %459 = vmatpush1.msra.mxu0 %v400
      %460 = vmatprep.subr.mxu0 0.0
      %461 = vmatpush1.msra.mxu0 %v401
      %462 = vmatprep.subr.mxu0 0.0
      %463 = vmatpush1.msra.mxu0 %v402
      %464 = vmatprep.subr.mxu0 0.0
      %465 = vmatpush1.msra.mxu0 %v403
      %466 = vmatprep.subr.mxu0 0.0
      %467 = vmatpush1.msra.mxu0 %v404
      %468 = vmatprep.subr.mxu0 0.0
      %469 = vmatpush1.msra.mxu0 %v405
      %470 = vmatprep.subr.mxu0 0.0
      %471 = vmatpush1.msra.mxu0 %v406
      %472 = vmatprep.subr.mxu0 0.0
      %473 = vmatpush1.msra.mxu0 %v407
      %474 = vmatprep.subr.mxu0 0.0
      %475 = vmatpush1.msra.mxu0 %v408
      %476 = vmatprep.subr.mxu0 0.0
      %477 = vmatpush1.msra.mxu0 %v409
      %478 = vmatprep.subr.mxu0 0.0
      %479 = vmatpush1.msra.mxu0 %v410
      %480 = vmatprep.subr.mxu0 0.0
      %481 = vmatpush1.msra.mxu0 %v411
      %482 = vmatprep.subr.mxu0 0.0
      %483 = vmatpush1.msra.mxu0 %v412
      %484 = vmatprep.subr.mxu0 0.0
      %485 = vmatpush1.msra.mxu0 %v413
      %486 = vmatprep.subr.mxu0 0.0
      %487 = vmatpush1.msra.mxu0 %v414
      %488 = vmatprep.subr.mxu0 0.0
      %489 = vmatpush1.msra.mxu0 %v415
      %490 = vmatprep.subr.mxu0 0.0
      %491 = vmatpush1.msra.mxu0 %v416
      %492 = vmatprep.subr.mxu0 0.0
      %493 = vmatpush1.msra.mxu0 %v417
      %494 = vmatprep.subr.mxu0 0.0
      %495 = vmatpush1.msra.mxu0 %v418
      %496 = vmatprep.subr.mxu0 0.0
      %497 = vmatpush1.msra.mxu0 %v419
      %498 = vmatprep.subr.mxu0 0.0
      %499 = vmatpush1.msra.mxu0 %v420
      %500 = vmatprep.subr.mxu0 0.0
      %501 = vmatpush1.msra.mxu0 %v421
      %502 = vmatprep.subr.mxu0 0.0
      %503 = vmatpush1.msra.mxu0 %v422
      %504 = vmatprep.subr.mxu0 0.0
      %505 = vmatpush1.msra.mxu0 %v423
      %506 = vmatprep.subr.mxu0 0.0
      %507 = vmatpush1.msra.mxu0 %v424
      %508 = vmatprep.subr.mxu0 0.0
      %509 = vmatpush1.msra.mxu0 %v425
      %510 = vmatprep.subr.mxu0 0.0
      %511 = vmatpush1.msra.mxu0 %v426
      %512 = vmatprep.subr.mxu0 0.0
      %513 = vmatpush1.msra.mxu0 %v427
      %514 = vmatprep.subr.mxu0 0.0
      %515 = vmatpush1.msra.mxu0 %v428
      %516 = vmatprep.mubr.f32.mxu0 %v392
      %517 = vmatmul.mubr.f32.gmra.mrb[0].mxu0 %v391
      %v518 = vpop.f32.mrb[0].mxu0
      %v519 = vadd.f32 %v450, %v518
      %v520 = vpop.f32.mrb[0].mxu0
      %521 = vmatprep.mubr.f32.mxu0 %v395
      %522 = vmatmul.mubr.f32.gmra.mrb[0].mxu0 %v394
      %v523 = vpop.f32.mrb[0].mxu0
      %v524 = vadd.f32 %v450, %v523
      %v525 = vpop.f32.mrb[0].mxu0
      %526 = vdwg.mxu0
      %527 = vmatprep.subr.mxu0 0.0
      %528 = vmatpush1.msra.mxu0 %v429
      %529 = vmatprep.subr.mxu0 0.0
      %530 = vmatpush1.msra.mxu0 %v430
      %531 = vmatprep.subr.mxu0 0.0
      %532 = vmatpush1.msra.mxu0 %v431
      %533 = vmatprep.subr.mxu0 0.0
      %534 = vmatpush1.msra.mxu0 %v432
      %535 = vmatprep.subr.mxu0 0.0
      %536 = vmatpush1.msra.mxu0 %v433
      %537 = vmatprep.subr.mxu0 0.0
      %538 = vmatpush1.msra.mxu0 %v434
      %539 = vmatprep.subr.mxu0 0.0
      %540 = vmatpush1.msra.mxu0 %v435
      %541 = vmatprep.subr.mxu0 0.0
      %542 = vmatpush1.msra.mxu0 %v436
      %543 = vmatprep.subr.mxu0 0.0
      %544 = vmatpush1.msra.mxu0 %v437
      %545 = vmatprep.subr.mxu0 0.0
      %546 = vmatpush1.msra.mxu0 %v438
      %547 = vmatprep.subr.mxu0 0.0
      %548 = vmatpush1.msra.mxu0 %v439
      %549 = vmatprep.subr.mxu0 0.0
      %550 = vmatpush1.msra.mxu0 %v440
      %551 = vmatprep.subr.mxu0 0.0
      %552 = vmatpush1.msra.mxu0 %v441
      %553 = vmatprep.subr.mxu0 0.0
      %554 = vmatpush1.msra.mxu0 %v442
      %555 = vmatprep.subr.mxu0 0.0
      %556 = vmatpush1.msra.mxu0 %v443
      %557 = vmatprep.subr.mxu0 0.0
      %558 = vmatpush1.msra.mxu0 %v444
      %559 = vmatprep.subr.mxu0 0.0
      %560 = vmatpush1.msra.mxu0 0.0
      %561 = vmatprep.subr.mxu0 0.0
      %562 = vmatpush1.msra.mxu0 0.0
      %563 = vmatprep.subr.mxu0 0.0
      %564 = vmatpush1.msra.mxu0 0.0
      %565 = vmatprep.subr.mxu0 0.0
      %566 = vmatpush1.msra.mxu0 0.0
      %567 = vmatprep.subr.mxu0 0.0
      %568 = vmatpush1.msra.mxu0 0.0
      %569 = vmatprep.subr.mxu0 0.0
      %570 = vmatpush1.msra.mxu0 0.0
      %571 = vmatprep.subr.mxu0 0.0
      %572 = vmatpush1.msra.mxu0 0.0
      %573 = vmatprep.subr.mxu0 0.0
      %574 = vmatpush1.msra.mxu0 0.0
      %575 = vmatprep.subr.mxu0 0.0
      %576 = vmatpush1.msra.mxu0 0.0
      %577 = vmatprep.subr.mxu0 0.0
      %578 = vmatpush1.msra.mxu0 0.0
      %579 = vmatprep.subr.mxu0 0.0
      %580 = vmatpush1.msra.mxu0 0.0
      %581 = vmatprep.subr.mxu0 0.0
      %582 = vmatpush1.msra.mxu0 0.0
      %583 = vmatprep.subr.mxu0 0.0
      %584 = vmatpush1.msra.mxu0 0.0
      %585 = vmatprep.subr.mxu0 0.0
      %586 = vmatpush1.msra.mxu0 0.0
      %587 = vmatprep.subr.mxu0 0.0
      %588 = vmatpush1.msra.mxu0 0.0
      %589 = vmatprep.subr.mxu0 0.0
      %590 = vmatpush1.msra.mxu0 0.0
      %591 = vmatprep.mubr.f32.mxu0 0.0
      %592 = vmatmul.mubr.f32.gmra.mrb[0].mxu0 %v393
      %v593 = vpop.f32.mrb[0].mxu0
      %v594 = vadd.f32 %v519, %v593
      %v595 = vpop.f32.mrb[0].mxu0
      %596 = vmatprep.mubr.f32.mxu0 0.0
      %597 = vmatmul.mubr.f32.gmra.mrb[0].mxu0 %v396
      %v598 = vpop.f32.mrb[0].mxu0
      %v599 = vadd.f32 %v524, %v598
      %v600 = vpop.f32.mrb[0].mxu0
      %601 = vdwg.mxu0
      %v602 = vld [vmem:[%s323] sm:$0xff]
      %v603 = vld [vmem:[%s323 + $0x8] sm:$0xff]
      %v604 = vld [vmem:[%s6] sm:$0x1]
      %v606 = vlaneseq
      %v607 = vshrl.u32 %v606, 7
      %v608 = vsub.s32 0, %v607
      %v609 = vrot.slane %v604, %v608
      %v611 = vmul.f32 %v602, %v609
      %v612 = vmul.f32 %v603, %v609
      %v613 = vadd.f32 %v594, %v611
      %v614 = vadd.f32 %v599, %v612
      %v615 = vld [vmem:[%s7] sm:$0x1]
      %v617 = vlaneseq
      %v618 = vshrl.u32 %v617, 7
      %v619 = vsub.s32 0, %v618
      %v620 = vrot.slane %v615, %v619
      %v622 = vadd.f32 %v613, %v620
      %v623 = vadd.f32 %v614, %v620
      %624 = vst [vmem:[%s329] sm:$0xff] %v622
      %625 = vst [vmem:[%s329 + $0x8] sm:$0xff] %v623
      %s626 = smul.u32 2, %s19
      %p627 = scmp.lt.s32.totalorder %s626, 3
      %s628 = scalar_select %p627, %s626, 3
      %s629 = smul.addr %s628, 8
      %s630 = scalar_lea.vmem %s8, %s629
      // Predicated region
      $region53: #{residual_conv_forward.5} parent=51 // pred_check
        %p631 = pneg %p215
      $region54: #{residual_conv_forward.5} parent=51 // pred_check_branch
        %633 = sbr.rel (%p631) target = $region56
      $region55: #{residual_conv_forward.5} parent=51 // pred_region
        %s634 = smul.u32 2, %s19
      $region56: #{residual_conv_forward.5} parent=51 // pred_fallthru
        _
    $region52: #{residual_conv_forward.5} parent=5 // pred_fallthru
      _
    %p635 = scmp.le.s32.totalorder 2, %s14
    // Predicated region
    $region57: #{residual_conv_forward.5} parent=5 // pred_check
      %p636 = pneg %p635
    $region58: #{residual_conv_forward.5} parent=5 // pred_check_branch
      %638 = sbr.rel (%p636) target = $region60
    $region59: #{residual_conv_forward.5} parent=5 // pred_region
      %s639 = ssub.s32 %s14, 2
      // Predicated region
      $region61: #{residual_conv_forward.5} parent=59 // pred_check
        %p640 = pneg %p221
      $region62: #{residual_conv_forward.5} parent=59 // pred_check_branch
        %642 = sbr.rel (%p640) target = $region64
      $region63: #{residual_conv_forward.5} parent=59 // pred_region
        %s643 = smul.u32 2, %s20
        %p644 = scmp.lt.s32.totalorder %s643, 3
        %s645 = scalar_select %p644, %s643, 3
        %s646 = smul.addr %s645, 8
        %s647 = scalar_lea.vmem %s8, %s646
      $region64: #{residual_conv_forward.5} parent=59 // pred_fallthru
        _
    $region60: #{residual_conv_forward.5} parent=5 // pred_fallthru
      _
  $region6: #{residual_conv_forward.5} parent=0 // loop_footer
    %s18 = sadd.s32 1, %s14
  $region7: #{residual_conv_forward.5} parent=0 // loop_footer_branch
    %13 = sbr.rel target = $region3
  $region8: #{residual_conv_forward.5} parent=0 // loop_exit
    _

</llo_original>
